<compile_context>
chip_gen: v7x
topology: tpu7x:2x2x1
jax: 0.10.0
libtpu: 0.0.40
codegen_flags: <defaults>
</compile_context>

<pallas_src>
import jax
import jax.numpy as jnp
from jax.experimental import pallas as pl
from jax.experimental.pallas import tpu as pltpu

LATENT_DIMS = 2
IN_FEATURES = 784            # 1 * 28 * 28
IN_PADDED = 896              # 7 * 128 (lane-aligned K for the first matmul)
HIDDEN = 512


def vae_encoder_kernel(x_ref, w1_ref, b1_ref, w23_ref, b23_ref, eps_ref,
                       z_ref, kl_ref):
    # ---- stage 1: linear1 + ReLU (bf16 inputs, f32 accumulation) ----
    h = jnp.dot(x_ref[...], w1_ref[...],
                preferred_element_type=jnp.float32) + b1_ref[...]      # (B, 512) f32
    h = jnp.maximum(h, 0.0)

    # ---- stage 2: fused [linear2 | linear3] -> (B, 4) ----
    hb = h.astype(jnp.bfloat16)
    out = jnp.dot(hb, w23_ref[...],
                  preferred_element_type=jnp.float32) + b23_ref[...]   # (B, 4) f32

    mu = out[:, :LATENT_DIMS]                                          # (B, 2)
    s_log = out[:, LATENT_DIMS:]                                       # (B, 2)
    sigma = jnp.exp(s_log)                                             # EUP

    # reparameterization: z = mu + sigma * eps
    z_ref[...] = mu + sigma * eps_ref[...]

    # kl = sum(sigma^2 + mu^2 - log(sigma) - 1/2), log(sigma) == s_log exactly.
    # Scalar reduction goes straight to the SMEM output.
    kl_ref[0, 0] = jnp.sum(sigma * sigma + mu * mu - s_log - 0.5)


def prepare_params(params):
    """Fuse/pad/cast the nn.Linear params once so HBM holds bf16 weights."""
    w1, b1, w2, b2, w3, b3 = params
    w1p = jnp.pad(w1, ((0, IN_PADDED - IN_FEATURES), (0, 0))).astype(jnp.bfloat16)
    b1f = b1.reshape(1, HIDDEN).astype(jnp.float32)
    w23 = jnp.concatenate([w2, w3], axis=1).astype(jnp.bfloat16)       # (512, 4)
    b23 = jnp.concatenate([b2, b3]).reshape(1, 2 * LATENT_DIMS).astype(jnp.float32)
    return (w1p, b1f, w23, b23)


def variational_encoder_forward(x_nchw, prepared_params, eps):
    """x_nchw: (B, 1, 28, 28) f32. Returns (z: (B, latent), kl: scalar)."""
    B = x_nchw.shape[0]
    x_flat = x_nchw.reshape(B, -1)                                     # (B, 784)
    x_pad = jnp.pad(x_flat, ((0, 0), (0, IN_PADDED - IN_FEATURES)))    # (B, 896)
    x_bf = x_pad.astype(jnp.bfloat16)

    w1p, b1f, w23, b23 = prepared_params

    full = lambda shape: pl.BlockSpec(shape, lambda: tuple(0 for _ in shape))

    z, kl = pl.pallas_call(
        vae_encoder_kernel,
        out_shape=(
            jax.ShapeDtypeStruct((B, LATENT_DIMS), jnp.float32),
            jax.ShapeDtypeStruct((1, 1), jnp.float32),
        ),
        grid=(),
        in_specs=[
            full((B, IN_PADDED)),                 # x        (bf16)
            full((IN_PADDED, HIDDEN)),            # w1       (bf16)
            full((1, HIDDEN)),                    # b1       (f32)
            full((HIDDEN, 2 * LATENT_DIMS)),      # w2|w3    (bf16)
            full((1, 2 * LATENT_DIMS)),           # b2|b3    (f32)
            full((B, LATENT_DIMS)),               # eps      (f32)
        ],
        out_specs=(
            full((B, LATENT_DIMS)),                                   # z -> VMEM
            pl.BlockSpec(memory_space=pltpu.MemorySpace.SMEM),        # kl -> SMEM scalar
        ),
        compiler_params=pltpu.CompilerParams(vmem_limit_bytes=4 << 20),
    )(x_bf, w1p, b1f, w23, b23, eps)

    return z, kl[0, 0]


def init_params(key):
    """Deterministic init matching nn.Linear shapes (stored transposed: (in, out))."""
    k1, k2, k3, k4, k5, k6 = jax.random.split(key, 6)

    def uniform(k, shape, fan_in):
        bound = 1.0 / jnp.sqrt(jnp.float32(fan_in))
        return jax.random.uniform(k, shape, jnp.float32, -bound, bound)

    w1 = uniform(k1, (IN_FEATURES, HIDDEN), IN_FEATURES)
    b1 = uniform(k2, (HIDDEN,), IN_FEATURES)
    w2 = uniform(k3, (HIDDEN, LATENT_DIMS), HIDDEN)
    b2 = uniform(k4, (LATENT_DIMS,), HIDDEN)
    w3 = uniform(k5, (HIDDEN, LATENT_DIMS), HIDDEN)
    b3 = uniform(k6, (LATENT_DIMS,), HIDDEN)
    return (w1, b1, w2, b2, w3, b3)


if __name__ == "__main__":
    key = jax.random.PRNGKey(0)
    k_x, k_params, k_eps = jax.random.split(key, 3)

    B = 2
    x = jax.random.normal(k_x, (B, 1, 28, 28), dtype=jnp.float32)     # NCHW, MNIST-sized
    params = init_params(k_params)
    prepared = prepare_params(params)
    # eps replaces self.N.sample(mu.shape); generated deterministically here.
    eps = jax.random.normal(k_eps, (B, LATENT_DIMS), dtype=jnp.float32)

    z, kl = variational_encoder_forward(x, prepared, eps)
    jax.block_until_ready((z, kl))

    # pure-JAX reference, matched to the kernel's bf16 storage/feed precision
    w1p, b1f, w23, b23 = prepared
    xf = x.reshape(B, -1)
    x_pad = jnp.pad(xf, ((0, 0), (0, IN_PADDED - IN_FEATURES)))
    xb = x_pad.astype(jnp.bfloat16).astype(jnp.float32)
    w1f = w1p.astype(jnp.float32)
    h = jax.nn.relu(xb @ w1f + b1f)
    hb = h.astype(jnp.bfloat16).astype(jnp.float32)
    out = hb @ w23.astype(jnp.float32) + b23
    mu = out[:, :LATENT_DIMS]
    s_log = out[:, LATENT_DIMS:]
    sigma = jnp.exp(s_log)
    z_ref = mu + sigma * eps
    kl_ref = jnp.sum(sigma ** 2 + mu ** 2 - s_log - 0.5)

    assert jnp.allclose(z, z_ref, atol=1e-3, rtol=1e-3), (z, z_ref)
    assert jnp.allclose(kl, kl_ref, atol=1e-2, rtol=1e-3), (kl, kl_ref)

    print("KERNEL_OK")
</pallas_src>

<mosaic_0001>
module attributes {stable_mosaic.version = 11 : i64} {
  func.func @vae_encoder_kernel(%arg0: memref<2x896xbf16, #tpu.memory_space<vmem>>, %arg1: memref<896x512xbf16, #tpu.memory_space<vmem>>, %arg2: memref<1x512xf32, #tpu.memory_space<vmem>>, %arg3: memref<512x4xbf16, #tpu.memory_space<vmem>>, %arg4: memref<1x4xf32, #tpu.memory_space<vmem>>, %arg5: memref<2x2xf32, #tpu.memory_space<vmem>>, %arg6: memref<2x2xf32, #tpu.memory_space<vmem>>, %arg7: memref<1x1xf32, #tpu.memory_space<smem>>) attributes {dimension_semantics = [], scalar_prefetch = 0 : i64, scratch_operands = 0 : i64, tpu.core_type = #tpu.core_type<tc>} {
    %c0 = arith.constant 0 : index
    %c0_0 = arith.constant 0 : index
    %0 = vector.load %arg0[%c0, %c0_0] : memref<2x896xbf16, #tpu.memory_space<vmem>>, vector<2x896xbf16>
    %c0_1 = arith.constant 0 : index
    %c0_2 = arith.constant 0 : index
    %1 = vector.load %arg1[%c0_1, %c0_2] : memref<896x512xbf16, #tpu.memory_space<vmem>>, vector<896x512xbf16>
    %cst = arith.constant dense<0.000000e+00> : vector<2x512xf32>
    %2 = tpu.matmul %0, %1, %cst {dimension_numbers = #tpu.dot_dimension_numbers<[1], [0], [0], [1], [0, 0, 1, 1], [], []>} : vector<2x896xbf16>, vector<896x512xbf16>, vector<2x512xf32> -> vector<2x512xf32>
    %c0_3 = arith.constant 0 : index
    %c0_4 = arith.constant 0 : index
    %3 = vector.load %arg2[%c0_3, %c0_4] : memref<1x512xf32, #tpu.memory_space<vmem>>, vector<1x512xf32>
    %4 = vector.broadcast %3 : vector<1x512xf32> to vector<2x512xf32>
    %5 = arith.addf %2, %4 : vector<2x512xf32>
    %cst_5 = arith.constant 0.000000e+00 : f32
    %6 = vector.broadcast %cst_5 : f32 to vector<2x512xf32>
    %7 = arith.maximumf %5, %6 : vector<2x512xf32>
    %8 = arith.truncf %7 : vector<2x512xf32> to vector<2x512xbf16>
    %c0_6 = arith.constant 0 : index
    %c0_7 = arith.constant 0 : index
    %9 = vector.load %arg3[%c0_6, %c0_7] : memref<512x4xbf16, #tpu.memory_space<vmem>>, vector<512x4xbf16>
    %cst_8 = arith.constant dense<0.000000e+00> : vector<2x4xf32>
    %10 = tpu.matmul %8, %9, %cst_8 {dimension_numbers = #tpu.dot_dimension_numbers<[1], [0], [0], [1], [0, 0, 1, 1], [], []>} : vector<2x512xbf16>, vector<512x4xbf16>, vector<2x4xf32> -> vector<2x4xf32>
    %c0_9 = arith.constant 0 : index
    %c0_10 = arith.constant 0 : index
    %11 = vector.load %arg4[%c0_9, %c0_10] : memref<1x4xf32, #tpu.memory_space<vmem>>, vector<1x4xf32>
    %12 = vector.broadcast %11 : vector<1x4xf32> to vector<2x4xf32>
    %13 = arith.addf %10, %12 : vector<2x4xf32>
    %14 = vector.extract_strided_slice %13 {offsets = [0, 0], sizes = [2, 2], strides = [1, 1]} : vector<2x4xf32> to vector<2x2xf32>
    %15 = vector.extract_strided_slice %13 {offsets = [0, 2], sizes = [2, 2], strides = [1, 1]} : vector<2x4xf32> to vector<2x2xf32>
    %16 = math.exp %15 : vector<2x2xf32>
    %c0_11 = arith.constant 0 : index
    %c0_12 = arith.constant 0 : index
    %17 = vector.load %arg5[%c0_11, %c0_12] : memref<2x2xf32, #tpu.memory_space<vmem>>, vector<2x2xf32>
    %18 = arith.mulf %16, %17 : vector<2x2xf32>
    %19 = arith.addf %14, %18 : vector<2x2xf32>
    %c0_13 = arith.constant 0 : index
    %c0_14 = arith.constant 0 : index
    %20 = vector.load %arg6[%c0_13, %c0_14] : memref<2x2xf32, #tpu.memory_space<vmem>>, vector<2x2xf32>
    tpu.vector_store %arg6[%c0_13, %c0_14], %19 {strides = array<i32>} : memref<2x2xf32, #tpu.memory_space<vmem>>, vector<2x2xf32>,
    %21 = arith.mulf %16, %16 : vector<2x2xf32>
    %22 = arith.mulf %14, %14 : vector<2x2xf32>
    %23 = arith.addf %21, %22 : vector<2x2xf32>
    %24 = arith.subf %23, %15 : vector<2x2xf32>
    %cst_15 = arith.constant 5.000000e-01 : f32
    %25 = vector.broadcast %cst_15 : f32 to vector<2x2xf32>
    %26 = arith.subf %24, %25 : vector<2x2xf32>
    %27 = vector.shape_cast %26 : vector<2x2xf32> to vector<1x2x2xf32>
    %cst_16 = arith.constant dense<0.000000e+00> : vector<1xf32>
    %28 = vector.multi_reduction <add>, %27, %cst_16 [1, 2] : vector<1x2x2xf32> to vector<1xf32>
    %29 = vector.shape_cast %28 : vector<1xf32> to vector<1x1x1xf32>
    %30 = vector.extract %29[0, 0, 0] : f32 from vector<1x1x1xf32>
    %c0_17 = arith.constant 0 : index
    %c0_18 = arith.constant 0 : index
    %31 = memref.load %arg7[%c0_17, %c0_18] : memref<1x1xf32, #tpu.memory_space<smem>>
    memref.store %30, %arg7[%c0_17, %c0_18] : memref<1x1xf32, #tpu.memory_space<smem>>
    return
  }
}

</mosaic_0001>

<llo_original>
// kernel: tpu_custom_call.1
$region0: #{tpu_custom_call.1}
  #allocation0 [shape = 'u32[]', space=smem, size = 0x4, offset = 0x4, fixed_abs, tag = 'smem constant byte address 0x4 - core index']
  #allocation1 [shape = 'u32[144,128]{1,0:T(1,128)}', space=vmem, size = 0x12000, scoped, tag = 'internal scratch']
  %s0 = inlined_call_operand.vmem [shape: bf16[2,896], index: 0, kind: input, shape index: {}]
  %s1 = inlined_call_operand.hbm [shape: bf16[896,512], index: 1, kind: input, shape index: {}]
  %s2 = inlined_call_operand.vmem [shape: f32[1,512], index: 2, kind: input, shape index: {}]
  %s3 = inlined_call_operand.vmem [shape: bf16[512,4], index: 3, kind: input, shape index: {}]
  %s4 = inlined_call_operand.vmem [shape: f32[1,4], index: 4, kind: input, shape index: {}]
  %s5 = inlined_call_operand.vmem [shape: f32[2,2], index: 5, kind: input, shape index: {}]
  %s6 = inlined_call_operand.hbm [shape: f32[2,2], index: 6, kind: output, shape index: {0}]
  %s7 = inlined_call_operand.hbm [shape: f32[1,1], index: 7, kind: output, shape index: {1}]
  %8 = xla_tuple %s6, %s7
  %s9 = sld [smem:[#allocation0]]
  $region46: #{tpu_custom_call.1} parent=0
    _
  %s11 = ssub.s32 1, %s9
  %s12 = scalar_select 0, %s11, %s9
  $region1: #{tpu_custom_call.1} parent=0
    #allocation2 [shape = 'u8[917504]{0}', space=vmem, size = 0xe0000, scoped, tag = 'input window, operand 1, single buffered']
    #allocation3 [shape = 's32[1]{0}', space=sflag, size = 0x4, scoped, tag = 'scoped memory for tpu_custom_call.1']
    #allocation4 [shape = 's32[1]{0}', space=sflag, size = 0x4, scoped, tag = 'scoped memory for tpu_custom_call.1']
    #allocation5 [shape = 's32[1]{0}', space=sflag, size = 0x4, scoped, tag = 'scoped memory for tpu_custom_call.1']
    #allocation6 [shape = 'u8[1024]{0}', space=vmem, size = 0x400, scoped, tag = 'output window, operand 0, single buffered']
    #allocation7 [shape = 'u8[512]{0}', space=smem, size = 0x200, scoped, tag = 'output window, operand 1, single buffered']
    %13 = vsyncpa [#allocation3], 0
    %14 = vsyncpa [#allocation4], 0
    %15 = vsyncpa [#allocation5], 0
    // Predicated region
    $region2: #{tpu_custom_call.1} parent=1 // pred_check
      _
    $region3: #{tpu_custom_call.1} parent=1 // pred_check_branch
      %17 = sbr.rel (0) target = $region5
    $region4: #{tpu_custom_call.1} parent=1 // pred_region
      _
    $region5: #{tpu_custom_call.1} parent=1 // pred_fallthru
      _
    // Predicated region
    $region6: #{tpu_custom_call.1} parent=1 // pred_check
      _
    $region7: #{tpu_custom_call.1} parent=1 // pred_check_branch
      %19 = sbr.rel (0) target = $region9
    $region8: #{tpu_custom_call.1} parent=1 // pred_region
      %s21 = ssub.s32 28672, 28672
      %22 = vsyncadd [#allocation3], %s21
      %s23 = sshll.u32 [#allocation2], 4
      %s24 = int_to_ptr.vmem [resolvable:$true] %s23
      %29 = dma.hbm_to_vmem [thread:$0]  %s1, 28672, %s24, [#allocation3], 256, 256, 16
    $region9: #{tpu_custom_call.1} parent=1 // pred_fallthru
      _
    // Predicated region
    $region10: #{tpu_custom_call.1} parent=1 // pred_check
      _
    $region11: #{tpu_custom_call.1} parent=1 // pred_check_branch
      %31 = sbr.rel (0) target = $region13
    $region12: #{tpu_custom_call.1} parent=1 // pred_region
      _
    $region13: #{tpu_custom_call.1} parent=1 // pred_fallthru
      _
    // Predicated region
    $region14: #{tpu_custom_call.1} parent=1 // pred_check
      _
    $region15: #{tpu_custom_call.1} parent=1 // pred_check_branch
      %33 = sbr.rel (0) target = $region17
    $region16: #{tpu_custom_call.1} parent=1 // pred_region
      _
    $region17: #{tpu_custom_call.1} parent=1 // pred_fallthru
      _
    // Predicated region
    $region18: #{tpu_custom_call.1} parent=1 // pred_check
      _
    $region19: #{tpu_custom_call.1} parent=1 // pred_check_branch
      %35 = sbr.rel (0) target = $region21
    $region20: #{tpu_custom_call.1} parent=1 // pred_region
      _
    $region21: #{tpu_custom_call.1} parent=1 // pred_fallthru
      _
    // Predicated region
    $region22: #{tpu_custom_call.1} parent=1 // pred_check
      _
    $region23: #{tpu_custom_call.1} parent=1 // pred_check_branch
      %37 = sbr.rel (0) target = $region25
    $region24: #{tpu_custom_call.1} parent=1 // pred_region
      _
    $region25: #{tpu_custom_call.1} parent=1 // pred_fallthru
      _
    // Predicated region
    $region26: #{tpu_custom_call.1} parent=1 // pred_check
      _
    $region27: #{tpu_custom_call.1} parent=1 // pred_check_branch
      %39 = sbr.rel (0) target = $region29
    $region28: #{tpu_custom_call.1} parent=1 // pred_region
      %40 = dma.done [#allocation3], 28672
    $region29: #{tpu_custom_call.1} parent=1 // pred_fallthru
      _
    %v42 = vld [vmem:[%s0] sm:$0x7f]
    %v43 = vld [vmem:[#allocation2] sm:$0xff]
    %v44 = vld [vmem:[#allocation2 + $0x8] sm:$0xff]
    %v45 = vld [vmem:[#allocation2 + $0x10] sm:$0xff]
    %v46 = vld [vmem:[#allocation2 + $0x18] sm:$0xff]
    %v47 = vld [vmem:[#allocation2 + $0x20] sm:$0xff]
    %v48 = vld [vmem:[#allocation2 + $0x28] sm:$0xff]
    %v49 = vld [vmem:[#allocation2 + $0x30] sm:$0xff]
    %v50 = vld [vmem:[#allocation2 + $0x38] sm:$0xff]
    %v51 = vld [vmem:[#allocation2 + $0x40] sm:$0xff]
    %v52 = vld [vmem:[#allocation2 + $0x48] sm:$0xff]
    %v53 = vld [vmem:[#allocation2 + $0x50] sm:$0xff]
    %v54 = vld [vmem:[#allocation2 + $0x58] sm:$0xff]
    %v55 = vld [vmem:[#allocation2 + $0x60] sm:$0xff]
    %v56 = vld [vmem:[#allocation2 + $0x68] sm:$0xff]
    %v57 = vld [vmem:[#allocation2 + $0x70] sm:$0xff]
    %v58 = vld [vmem:[#allocation2 + $0x78] sm:$0xff]
    %v59 = vld [vmem:[#allocation2 + $0x80] sm:$0xff]
    %v60 = vld [vmem:[#allocation2 + $0x88] sm:$0xff]
    %v61 = vld [vmem:[#allocation2 + $0x90] sm:$0xff]
    %v62 = vld [vmem:[#allocation2 + $0x98] sm:$0xff]
    %v63 = vld [vmem:[#allocation2 + $0xa0] sm:$0xff]
    %v64 = vld [vmem:[#allocation2 + $0xa8] sm:$0xff]
    %v65 = vld [vmem:[#allocation2 + $0xb0] sm:$0xff]
    %v66 = vld [vmem:[#allocation2 + $0xb8] sm:$0xff]
    %v67 = vld [vmem:[#allocation2 + $0xc0] sm:$0xff]
    %v68 = vld [vmem:[#allocation2 + $0xc8] sm:$0xff]
    %v69 = vld [vmem:[#allocation2 + $0xd0] sm:$0xff]
    %v70 = vld [vmem:[#allocation2 + $0xd8] sm:$0xff]
    %v71 = vld [vmem:[#allocation2 + $0xe0] sm:$0xff]
    %v72 = vld [vmem:[#allocation2 + $0xe8] sm:$0xff]
    %v73 = vld [vmem:[#allocation2 + $0xf0] sm:$0xff]
    %v74 = vld [vmem:[#allocation2 + $0xf8] sm:$0xff]
    %v75 = vld [vmem:[#allocation2 + $0x100] sm:$0xff]
    %v76 = vld [vmem:[#allocation2 + $0x108] sm:$0xff]
    %v77 = vld [vmem:[#allocation2 + $0x110] sm:$0xff]
    %v78 = vld [vmem:[#allocation2 + $0x118] sm:$0xff]
    %v79 = vld [vmem:[#allocation2 + $0x120] sm:$0xff]
    %v80 = vld [vmem:[#allocation2 + $0x128] sm:$0xff]
    %v81 = vld [vmem:[#allocation2 + $0x130] sm:$0xff]
    %v82 = vld [vmem:[#allocation2 + $0x138] sm:$0xff]
    %v83 = vld [vmem:[#allocation2 + $0x140] sm:$0xff]
    %v84 = vld [vmem:[#allocation2 + $0x148] sm:$0xff]
    %v85 = vld [vmem:[#allocation2 + $0x150] sm:$0xff]
    %v86 = vld [vmem:[#allocation2 + $0x158] sm:$0xff]
    %v87 = vld [vmem:[#allocation2 + $0x160] sm:$0xff]
    %v88 = vld [vmem:[#allocation2 + $0x168] sm:$0xff]
    %v89 = vld [vmem:[#allocation2 + $0x170] sm:$0xff]
    %v90 = vld [vmem:[#allocation2 + $0x178] sm:$0xff]
    %v91 = vld [vmem:[#allocation2 + $0x180] sm:$0xff]
    %v92 = vld [vmem:[#allocation2 + $0x188] sm:$0xff]
    %v93 = vld [vmem:[#allocation2 + $0x190] sm:$0xff]
    %v94 = vld [vmem:[#allocation2 + $0x198] sm:$0xff]
    %v95 = vld [vmem:[#allocation2 + $0x1a0] sm:$0xff]
    %v96 = vld [vmem:[#allocation2 + $0x1a8] sm:$0xff]
    %v97 = vld [vmem:[#allocation2 + $0x1b0] sm:$0xff]
    %v98 = vld [vmem:[#allocation2 + $0x1b8] sm:$0xff]
    %v99 = vld [vmem:[#allocation2 + $0x1c0] sm:$0xff]
    %v100 = vld [vmem:[#allocation2 + $0x1c8] sm:$0xff]
    %v101 = vld [vmem:[#allocation2 + $0x1d0] sm:$0xff]
    %v102 = vld [vmem:[#allocation2 + $0x1d8] sm:$0xff]
    %v103 = vld [vmem:[#allocation2 + $0x1e0] sm:$0xff]
    %v104 = vld [vmem:[#allocation2 + $0x1e8] sm:$0xff]
    %v105 = vld [vmem:[#allocation2 + $0x1f0] sm:$0xff]
    %v106 = vld [vmem:[#allocation2 + $0x1f8] sm:$0xff]
    %v107 = vld [vmem:[#allocation2 + $0x200] sm:$0xff]
    %v108 = vld [vmem:[#allocation2 + $0x208] sm:$0xff]
    %v109 = vld [vmem:[#allocation2 + $0x210] sm:$0xff]
    %v110 = vld [vmem:[#allocation2 + $0x218] sm:$0xff]
    %v111 = vld [vmem:[#allocation2 + $0x220] sm:$0xff]
    %v112 = vld [vmem:[#allocation2 + $0x228] sm:$0xff]
    %v113 = vld [vmem:[#allocation2 + $0x230] sm:$0xff]
    %v114 = vld [vmem:[#allocation2 + $0x238] sm:$0xff]
    %v115 = vld [vmem:[#allocation2 + $0x240] sm:$0xff]
    %v116 = vld [vmem:[#allocation2 + $0x248] sm:$0xff]
    %v117 = vld [vmem:[#allocation2 + $0x250] sm:$0xff]
    %v118 = vld [vmem:[#allocation2 + $0x258] sm:$0xff]
    %v119 = vld [vmem:[#allocation2 + $0x260] sm:$0xff]
    %v120 = vld [vmem:[#allocation2 + $0x268] sm:$0xff]
    %v121 = vld [vmem:[#allocation2 + $0x270] sm:$0xff]
    %v122 = vld [vmem:[#allocation2 + $0x278] sm:$0xff]
    %v123 = vld [vmem:[#allocation2 + $0x280] sm:$0xff]
    %v124 = vld [vmem:[#allocation2 + $0x288] sm:$0xff]
    %v125 = vld [vmem:[#allocation2 + $0x290] sm:$0xff]
    %v126 = vld [vmem:[#allocation2 + $0x298] sm:$0xff]
    %v127 = vld [vmem:[#allocation2 + $0x2a0] sm:$0xff]
    %v128 = vld [vmem:[#allocation2 + $0x2a8] sm:$0xff]
    %v129 = vld [vmem:[#allocation2 + $0x2b0] sm:$0xff]
    %v130 = vld [vmem:[#allocation2 + $0x2b8] sm:$0xff]
    %v131 = vld [vmem:[#allocation2 + $0x2c0] sm:$0xff]
    %v132 = vld [vmem:[#allocation2 + $0x2c8] sm:$0xff]
    %v133 = vld [vmem:[#allocation2 + $0x2d0] sm:$0xff]
    %v134 = vld [vmem:[#allocation2 + $0x2d8] sm:$0xff]
    %v135 = vld [vmem:[#allocation2 + $0x2e0] sm:$0xff]
    %v136 = vld [vmem:[#allocation2 + $0x2e8] sm:$0xff]
    %v137 = vld [vmem:[#allocation2 + $0x2f0] sm:$0xff]
    %v138 = vld [vmem:[#allocation2 + $0x2f8] sm:$0xff]
    %v139 = vld [vmem:[#allocation2 + $0x300] sm:$0xff]
    %v140 = vld [vmem:[#allocation2 + $0x308] sm:$0xff]
    %v141 = vld [vmem:[#allocation2 + $0x310] sm:$0xff]
    %v142 = vld [vmem:[#allocation2 + $0x318] sm:$0xff]
    %v143 = vld [vmem:[#allocation2 + $0x320] sm:$0xff]
    %v144 = vld [vmem:[#allocation2 + $0x328] sm:$0xff]
    %v145 = vld [vmem:[#allocation2 + $0x330] sm:$0xff]
    %v146 = vld [vmem:[#allocation2 + $0x338] sm:$0xff]
    %v147 = vld [vmem:[#allocation2 + $0x340] sm:$0xff]
    %v148 = vld [vmem:[#allocation2 + $0x348] sm:$0xff]
    %v149 = vld [vmem:[#allocation2 + $0x350] sm:$0xff]
    %v150 = vld [vmem:[#allocation2 + $0x358] sm:$0xff]
    %v151 = vld [vmem:[#allocation2 + $0x360] sm:$0xff]
    %v152 = vld [vmem:[#allocation2 + $0x368] sm:$0xff]
    %v153 = vld [vmem:[#allocation2 + $0x370] sm:$0xff]
    %v154 = vld [vmem:[#allocation2 + $0x378] sm:$0xff]
    %v155 = vld [vmem:[#allocation2 + $0x380] sm:$0xff]
    %v156 = vld [vmem:[#allocation2 + $0x388] sm:$0xff]
    %v157 = vld [vmem:[#allocation2 + $0x390] sm:$0xff]
    %v158 = vld [vmem:[#allocation2 + $0x398] sm:$0xff]
    %v159 = vld [vmem:[#allocation2 + $0x3a0] sm:$0xff]
    %v160 = vld [vmem:[#allocation2 + $0x3a8] sm:$0xff]
    %v161 = vld [vmem:[#allocation2 + $0x3b0] sm:$0xff]
    %v162 = vld [vmem:[#allocation2 + $0x3b8] sm:$0xff]
    %v163 = vld [vmem:[#allocation2 + $0x3c0] sm:$0xff]
    %v164 = vld [vmem:[#allocation2 + $0x3c8] sm:$0xff]
    %v165 = vld [vmem:[#allocation2 + $0x3d0] sm:$0xff]
    %v166 = vld [vmem:[#allocation2 + $0x3d8] sm:$0xff]
    %v167 = vld [vmem:[#allocation2 + $0x3e0] sm:$0xff]
    %v168 = vld [vmem:[#allocation2 + $0x3e8] sm:$0xff]
    %v169 = vld [vmem:[#allocation2 + $0x3f0] sm:$0xff]
    %v170 = vld [vmem:[#allocation2 + $0x3f8] sm:$0xff]
    %v171 = vld [vmem:[#allocation2 + $0x400] sm:$0xff]
    %v172 = vld [vmem:[#allocation2 + $0x408] sm:$0xff]
    %v173 = vld [vmem:[#allocation2 + $0x410] sm:$0xff]
    %v174 = vld [vmem:[#allocation2 + $0x418] sm:$0xff]
    %v175 = vld [vmem:[#allocation2 + $0x420] sm:$0xff]
    %v176 = vld [vmem:[#allocation2 + $0x428] sm:$0xff]
    %v177 = vld [vmem:[#allocation2 + $0x430] sm:$0xff]
    %v178 = vld [vmem:[#allocation2 + $0x438] sm:$0xff]
    %v179 = vld [vmem:[#allocation2 + $0x440] sm:$0xff]
    %v180 = vld [vmem:[#allocation2 + $0x448] sm:$0xff]
    %v181 = vld [vmem:[#allocation2 + $0x450] sm:$0xff]
    %v182 = vld [vmem:[#allocation2 + $0x458] sm:$0xff]
    %v183 = vld [vmem:[#allocation2 + $0x460] sm:$0xff]
    %v184 = vld [vmem:[#allocation2 + $0x468] sm:$0xff]
    %v185 = vld [vmem:[#allocation2 + $0x470] sm:$0xff]
    %v186 = vld [vmem:[#allocation2 + $0x478] sm:$0xff]
    %v187 = vld [vmem:[#allocation2 + $0x480] sm:$0xff]
    %v188 = vld [vmem:[#allocation2 + $0x488] sm:$0xff]
    %v189 = vld [vmem:[#allocation2 + $0x490] sm:$0xff]
    %v190 = vld [vmem:[#allocation2 + $0x498] sm:$0xff]
    %v191 = vld [vmem:[#allocation2 + $0x4a0] sm:$0xff]
    %v192 = vld [vmem:[#allocation2 + $0x4a8] sm:$0xff]
    %v193 = vld [vmem:[#allocation2 + $0x4b0] sm:$0xff]
    %v194 = vld [vmem:[#allocation2 + $0x4b8] sm:$0xff]
    %v195 = vld [vmem:[#allocation2 + $0x4c0] sm:$0xff]
    %v196 = vld [vmem:[#allocation2 + $0x4c8] sm:$0xff]
    %v197 = vld [vmem:[#allocation2 + $0x4d0] sm:$0xff]
    %v198 = vld [vmem:[#allocation2 + $0x4d8] sm:$0xff]
    %v199 = vld [vmem:[#allocation2 + $0x4e0] sm:$0xff]
    %v200 = vld [vmem:[#allocation2 + $0x4e8] sm:$0xff]
    %v201 = vld [vmem:[#allocation2 + $0x4f0] sm:$0xff]
    %v202 = vld [vmem:[#allocation2 + $0x4f8] sm:$0xff]
    %v203 = vld [vmem:[#allocation2 + $0x500] sm:$0xff]
    %v204 = vld [vmem:[#allocation2 + $0x508] sm:$0xff]
    %v205 = vld [vmem:[#allocation2 + $0x510] sm:$0xff]
    %v206 = vld [vmem:[#allocation2 + $0x518] sm:$0xff]
    %v207 = vld [vmem:[#allocation2 + $0x520] sm:$0xff]
    %v208 = vld [vmem:[#allocation2 + $0x528] sm:$0xff]
    %v209 = vld [vmem:[#allocation2 + $0x530] sm:$0xff]
    %v210 = vld [vmem:[#allocation2 + $0x538] sm:$0xff]
    %v211 = vld [vmem:[#allocation2 + $0x540] sm:$0xff]
    %v212 = vld [vmem:[#allocation2 + $0x548] sm:$0xff]
    %v213 = vld [vmem:[#allocation2 + $0x550] sm:$0xff]
    %v214 = vld [vmem:[#allocation2 + $0x558] sm:$0xff]
    %v215 = vld [vmem:[#allocation2 + $0x560] sm:$0xff]
    %v216 = vld [vmem:[#allocation2 + $0x568] sm:$0xff]
    %v217 = vld [vmem:[#allocation2 + $0x570] sm:$0xff]
    %v218 = vld [vmem:[#allocation2 + $0x578] sm:$0xff]
    %v219 = vld [vmem:[#allocation2 + $0x580] sm:$0xff]
    %v220 = vld [vmem:[#allocation2 + $0x588] sm:$0xff]
    %v221 = vld [vmem:[#allocation2 + $0x590] sm:$0xff]
    %v222 = vld [vmem:[#allocation2 + $0x598] sm:$0xff]
    %v223 = vld [vmem:[#allocation2 + $0x5a0] sm:$0xff]
    %v224 = vld [vmem:[#allocation2 + $0x5a8] sm:$0xff]
    %v225 = vld [vmem:[#allocation2 + $0x5b0] sm:$0xff]
    %v226 = vld [vmem:[#allocation2 + $0x5b8] sm:$0xff]
    %v227 = vld [vmem:[#allocation2 + $0x5c0] sm:$0xff]
    %v228 = vld [vmem:[#allocation2 + $0x5c8] sm:$0xff]
    %v229 = vld [vmem:[#allocation2 + $0x5d0] sm:$0xff]
    %v230 = vld [vmem:[#allocation2 + $0x5d8] sm:$0xff]
    %v231 = vld [vmem:[#allocation2 + $0x5e0] sm:$0xff]
    %v232 = vld [vmem:[#allocation2 + $0x5e8] sm:$0xff]
    %v233 = vld [vmem:[#allocation2 + $0x5f0] sm:$0xff]
    %v234 = vld [vmem:[#allocation2 + $0x5f8] sm:$0xff]
    %v235 = vld [vmem:[#allocation2 + $0x600] sm:$0xff]
    %v236 = vld [vmem:[#allocation2 + $0x608] sm:$0xff]
    %v237 = vld [vmem:[#allocation2 + $0x610] sm:$0xff]
    %v238 = vld [vmem:[#allocation2 + $0x618] sm:$0xff]
    %v239 = vld [vmem:[#allocation2 + $0x620] sm:$0xff]
    %v240 = vld [vmem:[#allocation2 + $0x628] sm:$0xff]
    %v241 = vld [vmem:[#allocation2 + $0x630] sm:$0xff]
    %v242 = vld [vmem:[#allocation2 + $0x638] sm:$0xff]
    %v243 = vld [vmem:[#allocation2 + $0x640] sm:$0xff]
    %v244 = vld [vmem:[#allocation2 + $0x648] sm:$0xff]
    %v245 = vld [vmem:[#allocation2 + $0x650] sm:$0xff]
    %v246 = vld [vmem:[#allocation2 + $0x658] sm:$0xff]
    %v247 = vld [vmem:[#allocation2 + $0x660] sm:$0xff]
    %v248 = vld [vmem:[#allocation2 + $0x668] sm:$0xff]
    %v249 = vld [vmem:[#allocation2 + $0x670] sm:$0xff]
    %v250 = vld [vmem:[#allocation2 + $0x678] sm:$0xff]
    %v251 = vld [vmem:[#allocation2 + $0x680] sm:$0xff]
    %v252 = vld [vmem:[#allocation2 + $0x688] sm:$0xff]
    %v253 = vld [vmem:[#allocation2 + $0x690] sm:$0xff]
    %v254 = vld [vmem:[#allocation2 + $0x698] sm:$0xff]
    %v255 = vld [vmem:[#allocation2 + $0x6a0] sm:$0xff]
    %v256 = vld [vmem:[#allocation2 + $0x6a8] sm:$0xff]
    %v257 = vld [vmem:[#allocation2 + $0x6b0] sm:$0xff]
    %v258 = vld [vmem:[#allocation2 + $0x6b8] sm:$0xff]
    %v259 = vld [vmem:[#allocation2 + $0x6c0] sm:$0xff]
    %v260 = vld [vmem:[#allocation2 + $0x6c8] sm:$0xff]
    %v261 = vld [vmem:[#allocation2 + $0x6d0] sm:$0xff]
    %v262 = vld [vmem:[#allocation2 + $0x6d8] sm:$0xff]
    %v263 = vld [vmem:[#allocation2 + $0x6e0] sm:$0xff]
    %v264 = vld [vmem:[#allocation2 + $0x6e8] sm:$0xff]
    %v265 = vld [vmem:[#allocation2 + $0x6f0] sm:$0xff]
    %v266 = vld [vmem:[#allocation2 + $0x6f8] sm:$0xff]
    %v267 = vld [vmem:[%s2] sm:$0xf]
    %v269 = vlaneseq
    %v270 = vshrl.u32 %v269, 7
    %v271 = vsub.s32 0, %v270
    %v272 = vrot.slane %v267, %v271
    %v273 = vlaneseq
    %v274 = vshrl.u32 %v273, 7
    %v275 = vsub.s32 1, %v274
    %v276 = vrot.slane %v267, %v275
    %v277 = vlaneseq
    %v278 = vshrl.u32 %v277, 7
    %v279 = vsub.s32 2, %v278
    %v280 = vrot.slane %v267, %v279
    %v281 = vlaneseq
    %v282 = vshrl.u32 %v281, 7
    %v283 = vsub.s32 3, %v282
    %v284 = vrot.slane %v267, %v283
    %v290 = vcombine.high %v42, %v42
    %v292 = vunpack.c.l.s4 1966171168
    %v293 = vunpack.c.0.s8 %v292
    %v294 = vlaneseq
    %v295 = vshrl.u32 %v294, 7
    %v296 = vsub.s32 %v293, %v295
    %v297 = vrot.slane %v42, %v296
    %v299 = vunpack.c.l.s4 1966171168
    %v300 = vunpack.c.0.s8 %v299
    %v301 = vlaneseq
    %v302 = vshrl.u32 %v301, 7
    %v303 = vsub.s32 %v300, %v302
    %v304 = vrot.slane %v290, %v303
    %v305 = vcombine.high %v297, %v297
    %v306 = vcombine.high %v304, %v304
    %v308 = vunpack.c.l.s4 1966171168
    %v309 = vunpack.c.0.s8 %v308
    %v310 = vlaneseq
    %v311 = vshrl.u32 %v310, 7
    %v312 = vsub.s32 %v309, %v311
    %v313 = vrot.slane %v297, %v312
    %v315 = vunpack.c.l.s4 1966171168
    %v316 = vunpack.c.0.s8 %v315
    %v317 = vlaneseq
    %v318 = vshrl.u32 %v317, 7
    %v319 = vsub.s32 %v316, %v318
    %v320 = vrot.slane %v304, %v319
    %v322 = vunpack.c.l.s4 1966171168
    %v323 = vunpack.c.0.s8 %v322
    %v324 = vlaneseq
    %v325 = vshrl.u32 %v324, 7
    %v326 = vsub.s32 %v323, %v325
    %v327 = vrot.slane %v305, %v326
    %v329 = vunpack.c.l.s4 1966171168
    %v330 = vunpack.c.0.s8 %v329
    %v331 = vlaneseq
    %v332 = vshrl.u32 %v331, 7
    %v333 = vsub.s32 %v330, %v332
    %v334 = vrot.slane %v306, %v333
    %v335 = vcombine.high %v313, %v313
    %v336 = vcombine.high %v320, %v320
    %v337 = vcombine.high %v327, %v327
    %v569 = vunpack.c.l.b16 %v43
    %v570 = vunpack.c.h.b16 %v43
    %v571 = vunpack.c.l.b16 %v44
    %v572 = vunpack.c.h.b16 %v44
    %v573 = vunpack.c.l.b16 %v45
    %v574 = vunpack.c.h.b16 %v45
    %v575 = vunpack.c.l.b16 %v46
    %v576 = vunpack.c.h.b16 %v46
    %v577 = vunpack.c.l.b16 %v47
    %v578 = vunpack.c.h.b16 %v47
    %v579 = vunpack.c.l.b16 %v48
    %v580 = vunpack.c.h.b16 %v48
    %v581 = vunpack.c.l.b16 %v49
    %v582 = vunpack.c.h.b16 %v49
    %v583 = vunpack.c.l.b16 %v50
    %v584 = vunpack.c.h.b16 %v50
    %v585 = vunpack.c.l.b16 %v51
    %v586 = vunpack.c.h.b16 %v51
    %v587 = vunpack.c.l.b16 %v52
    %v588 = vunpack.c.h.b16 %v52
    %v589 = vunpack.c.l.b16 %v53
    %v590 = vunpack.c.h.b16 %v53
    %v591 = vunpack.c.l.b16 %v54
    %v592 = vunpack.c.h.b16 %v54
    %v593 = vunpack.c.l.b16 %v55
    %v594 = vunpack.c.h.b16 %v55
    %v595 = vunpack.c.l.b16 %v56
    %v596 = vunpack.c.h.b16 %v56
    %v597 = vunpack.c.l.b16 %v57
    %v598 = vunpack.c.h.b16 %v57
    %v599 = vunpack.c.l.b16 %v58
    %v600 = vunpack.c.h.b16 %v58
    %v601 = vunpack.c.l.b16 %v59
    %v602 = vunpack.c.h.b16 %v59
    %v603 = vunpack.c.l.b16 %v60
    %v604 = vunpack.c.h.b16 %v60
    %v605 = vunpack.c.l.b16 %v61
    %v606 = vunpack.c.h.b16 %v61
    %v607 = vunpack.c.l.b16 %v62
    %v608 = vunpack.c.h.b16 %v62
    %v609 = vunpack.c.l.b16 %v63
    %v610 = vunpack.c.h.b16 %v63
    %v611 = vunpack.c.l.b16 %v64
    %v612 = vunpack.c.h.b16 %v64
    %v613 = vunpack.c.l.b16 %v65
    %v614 = vunpack.c.h.b16 %v65
    %v615 = vunpack.c.l.b16 %v66
    %v616 = vunpack.c.h.b16 %v66
    %v617 = vunpack.c.l.b16 %v67
    %v618 = vunpack.c.h.b16 %v67
    %v619 = vunpack.c.l.b16 %v68
    %v620 = vunpack.c.h.b16 %v68
    %v621 = vunpack.c.l.b16 %v69
    %v622 = vunpack.c.h.b16 %v69
    %v623 = vunpack.c.l.b16 %v70
    %v624 = vunpack.c.h.b16 %v70
    %v625 = vunpack.c.l.b16 %v71
    %v626 = vunpack.c.h.b16 %v71
    %v627 = vunpack.c.l.b16 %v72
    %v628 = vunpack.c.h.b16 %v72
    %v629 = vunpack.c.l.b16 %v73
    %v630 = vunpack.c.h.b16 %v73
    %v631 = vunpack.c.l.b16 %v74
    %v632 = vunpack.c.h.b16 %v74
    %v633 = vunpack.c.l.b16 %v75
    %v634 = vunpack.c.h.b16 %v75
    %v635 = vunpack.c.l.b16 %v76
    %v636 = vunpack.c.h.b16 %v76
    %v637 = vunpack.c.l.b16 %v77
    %v638 = vunpack.c.h.b16 %v77
    %v639 = vunpack.c.l.b16 %v78
    %v640 = vunpack.c.h.b16 %v78
    %v641 = vunpack.c.l.b16 %v79
    %v642 = vunpack.c.h.b16 %v79
    %v643 = vunpack.c.l.b16 %v80
    %v644 = vunpack.c.h.b16 %v80
    %v645 = vunpack.c.l.b16 %v81
    %v646 = vunpack.c.h.b16 %v81
    %v647 = vunpack.c.l.b16 %v82
    %v648 = vunpack.c.h.b16 %v82
    %v649 = vunpack.c.l.b16 %v83
    %v650 = vunpack.c.h.b16 %v83
    %v651 = vunpack.c.l.b16 %v84
    %v652 = vunpack.c.h.b16 %v84
    %v653 = vunpack.c.l.b16 %v85
    %v654 = vunpack.c.h.b16 %v85
    %v655 = vunpack.c.l.b16 %v86
    %v656 = vunpack.c.h.b16 %v86
    %v657 = vunpack.c.l.b16 %v87
    %v658 = vunpack.c.h.b16 %v87
    %v659 = vunpack.c.l.b16 %v88
    %v660 = vunpack.c.h.b16 %v88
    %v661 = vunpack.c.l.b16 %v89
    %v662 = vunpack.c.h.b16 %v89
    %v663 = vunpack.c.l.b16 %v90
    %v664 = vunpack.c.h.b16 %v90
    %v665 = vunpack.c.l.b16 %v91
    %v666 = vunpack.c.h.b16 %v91
    %v667 = vunpack.c.l.b16 %v92
    %v668 = vunpack.c.h.b16 %v92
    %v669 = vunpack.c.l.b16 %v93
    %v670 = vunpack.c.h.b16 %v93
    %v671 = vunpack.c.l.b16 %v94
    %v672 = vunpack.c.h.b16 %v94
    %v673 = vunpack.c.l.b16 %v95
    %v674 = vunpack.c.h.b16 %v95
    %v675 = vunpack.c.l.b16 %v96
    %v676 = vunpack.c.h.b16 %v96
    %v677 = vunpack.c.l.b16 %v97
    %v678 = vunpack.c.h.b16 %v97
    %v679 = vunpack.c.l.b16 %v98
    %v680 = vunpack.c.h.b16 %v98
    %v681 = vunpack.c.l.b16 %v99
    %v682 = vunpack.c.h.b16 %v99
    %v683 = vunpack.c.l.b16 %v100
    %v684 = vunpack.c.h.b16 %v100
    %v685 = vunpack.c.l.b16 %v101
    %v686 = vunpack.c.h.b16 %v101
    %v687 = vunpack.c.l.b16 %v102
    %v688 = vunpack.c.h.b16 %v102
    %v689 = vunpack.c.l.b16 %v103
    %v690 = vunpack.c.h.b16 %v103
    %v691 = vunpack.c.l.b16 %v104
    %v692 = vunpack.c.h.b16 %v104
    %v693 = vunpack.c.l.b16 %v105
    %v694 = vunpack.c.h.b16 %v105
    %v695 = vunpack.c.l.b16 %v106
    %v696 = vunpack.c.h.b16 %v106
    %v697 = vunpack.c.l.b16 %v107
    %v698 = vunpack.c.h.b16 %v107
    %v699 = vunpack.c.l.b16 %v108
    %v700 = vunpack.c.h.b16 %v108
    %v701 = vunpack.c.l.b16 %v109
    %v702 = vunpack.c.h.b16 %v109
    %v703 = vunpack.c.l.b16 %v110
    %v704 = vunpack.c.h.b16 %v110
    %v705 = vunpack.c.l.b16 %v111
    %v706 = vunpack.c.h.b16 %v111
    %v707 = vunpack.c.l.b16 %v112
    %v708 = vunpack.c.h.b16 %v112
    %v709 = vunpack.c.l.b16 %v113
    %v710 = vunpack.c.h.b16 %v113
    %v711 = vunpack.c.l.b16 %v114
    %v712 = vunpack.c.h.b16 %v114
    %v713 = vunpack.c.l.b16 %v115
    %v714 = vunpack.c.h.b16 %v115
    %v715 = vunpack.c.l.b16 %v116
    %v716 = vunpack.c.h.b16 %v116
    %v717 = vunpack.c.l.b16 %v117
    %v718 = vunpack.c.h.b16 %v117
    %v719 = vunpack.c.l.b16 %v118
    %v720 = vunpack.c.h.b16 %v118
    %v721 = vunpack.c.l.b16 %v119
    %v722 = vunpack.c.h.b16 %v119
    %v723 = vunpack.c.l.b16 %v120
    %v724 = vunpack.c.h.b16 %v120
    %v725 = vunpack.c.l.b16 %v121
    %v726 = vunpack.c.h.b16 %v121
    %v727 = vunpack.c.l.b16 %v122
    %v728 = vunpack.c.h.b16 %v122
    %v729 = vunpack.c.l.b16 %v123
    %v730 = vunpack.c.h.b16 %v123
    %v731 = vunpack.c.l.b16 %v124
    %v732 = vunpack.c.h.b16 %v124
    %v733 = vunpack.c.l.b16 %v125
    %v734 = vunpack.c.h.b16 %v125
    %v735 = vunpack.c.l.b16 %v126
    %v736 = vunpack.c.h.b16 %v126
    %v737 = vunpack.c.l.b16 %v127
    %v738 = vunpack.c.h.b16 %v127
    %v739 = vunpack.c.l.b16 %v128
    %v740 = vunpack.c.h.b16 %v128
    %v741 = vunpack.c.l.b16 %v129
    %v742 = vunpack.c.h.b16 %v129
    %v743 = vunpack.c.l.b16 %v130
    %v744 = vunpack.c.h.b16 %v130
    %v745 = vunpack.c.l.b16 %v131
    %v746 = vunpack.c.h.b16 %v131
    %v747 = vunpack.c.l.b16 %v132
    %v748 = vunpack.c.h.b16 %v132
    %v749 = vunpack.c.l.b16 %v133
    %v750 = vunpack.c.h.b16 %v133
    %v751 = vunpack.c.l.b16 %v134
    %v752 = vunpack.c.h.b16 %v134
    %v753 = vunpack.c.l.b16 %v135
    %v754 = vunpack.c.h.b16 %v135
    %v755 = vunpack.c.l.b16 %v136
    %v756 = vunpack.c.h.b16 %v136
    %v757 = vunpack.c.l.b16 %v137
    %v758 = vunpack.c.h.b16 %v137
    %v759 = vunpack.c.l.b16 %v138
    %v760 = vunpack.c.h.b16 %v138
    %v761 = vunpack.c.l.b16 %v139
    %v762 = vunpack.c.h.b16 %v139
    %v763 = vunpack.c.l.b16 %v140
    %v764 = vunpack.c.h.b16 %v140
    %v765 = vunpack.c.l.b16 %v141
    %v766 = vunpack.c.h.b16 %v141
    %v767 = vunpack.c.l.b16 %v142
    %v768 = vunpack.c.h.b16 %v142
    %v769 = vunpack.c.l.b16 %v143
    %v770 = vunpack.c.h.b16 %v143
    %v771 = vunpack.c.l.b16 %v144
    %v772 = vunpack.c.h.b16 %v144
    %v773 = vunpack.c.l.b16 %v145
    %v774 = vunpack.c.h.b16 %v145
    %v775 = vunpack.c.l.b16 %v146
    %v776 = vunpack.c.h.b16 %v146
    %v777 = vunpack.c.l.b16 %v147
    %v778 = vunpack.c.h.b16 %v147
    %v779 = vunpack.c.l.b16 %v148
    %v780 = vunpack.c.h.b16 %v148
    %v781 = vunpack.c.l.b16 %v149
    %v782 = vunpack.c.h.b16 %v149
    %v783 = vunpack.c.l.b16 %v150
    %v784 = vunpack.c.h.b16 %v150
    %v785 = vunpack.c.l.b16 %v151
    %v786 = vunpack.c.h.b16 %v151
    %v787 = vunpack.c.l.b16 %v152
    %v788 = vunpack.c.h.b16 %v152
    %v789 = vunpack.c.l.b16 %v153
    %v790 = vunpack.c.h.b16 %v153
    %v791 = vunpack.c.l.b16 %v154
    %v792 = vunpack.c.h.b16 %v154
    %v793 = vunpack.c.l.b16 %v155
    %v794 = vunpack.c.h.b16 %v155
    %v795 = vunpack.c.l.b16 %v156
    %v796 = vunpack.c.h.b16 %v156
    %v797 = vunpack.c.l.b16 %v157
    %v798 = vunpack.c.h.b16 %v157
    %v799 = vunpack.c.l.b16 %v158
    %v800 = vunpack.c.h.b16 %v158
    %v801 = vunpack.c.l.b16 %v159
    %v802 = vunpack.c.h.b16 %v159
    %v803 = vunpack.c.l.b16 %v160
    %v804 = vunpack.c.h.b16 %v160
    %v805 = vunpack.c.l.b16 %v161
    %v806 = vunpack.c.h.b16 %v161
    %v807 = vunpack.c.l.b16 %v162
    %v808 = vunpack.c.h.b16 %v162
    %v809 = vunpack.c.l.b16 %v163
    %v810 = vunpack.c.h.b16 %v163
    %v811 = vunpack.c.l.b16 %v164
    %v812 = vunpack.c.h.b16 %v164
    %v813 = vunpack.c.l.b16 %v165
    %v814 = vunpack.c.h.b16 %v165
    %v815 = vunpack.c.l.b16 %v166
    %v816 = vunpack.c.h.b16 %v166
    %v817 = vunpack.c.l.b16 %v167
    %v818 = vunpack.c.h.b16 %v167
    %v819 = vunpack.c.l.b16 %v168
    %v820 = vunpack.c.h.b16 %v168
    %v821 = vunpack.c.l.b16 %v169
    %v822 = vunpack.c.h.b16 %v169
    %v823 = vunpack.c.l.b16 %v170
    %v824 = vunpack.c.h.b16 %v170
    %v825 = vunpack.c.l.b16 %v171
    %v826 = vunpack.c.h.b16 %v171
    %v827 = vunpack.c.l.b16 %v172
    %v828 = vunpack.c.h.b16 %v172
    %v829 = vunpack.c.l.b16 %v173
    %v830 = vunpack.c.h.b16 %v173
    %v831 = vunpack.c.l.b16 %v174
    %v832 = vunpack.c.h.b16 %v174
    %v833 = vunpack.c.l.b16 %v175
    %v834 = vunpack.c.h.b16 %v175
    %v835 = vunpack.c.l.b16 %v176
    %v836 = vunpack.c.h.b16 %v176
    %v837 = vunpack.c.l.b16 %v177
    %v838 = vunpack.c.h.b16 %v177
    %v839 = vunpack.c.l.b16 %v178
    %v840 = vunpack.c.h.b16 %v178
    %v841 = vunpack.c.l.b16 %v179
    %v842 = vunpack.c.h.b16 %v179
    %v843 = vunpack.c.l.b16 %v180
    %v844 = vunpack.c.h.b16 %v180
    %v845 = vunpack.c.l.b16 %v181
    %v846 = vunpack.c.h.b16 %v181
    %v847 = vunpack.c.l.b16 %v182
    %v848 = vunpack.c.h.b16 %v182
    %v849 = vunpack.c.l.b16 %v183
    %v850 = vunpack.c.h.b16 %v183
    %v851 = vunpack.c.l.b16 %v184
    %v852 = vunpack.c.h.b16 %v184
    %v853 = vunpack.c.l.b16 %v185
    %v854 = vunpack.c.h.b16 %v185
    %v855 = vunpack.c.l.b16 %v186
    %v856 = vunpack.c.h.b16 %v186
    %v857 = vunpack.c.l.b16 %v187
    %v858 = vunpack.c.h.b16 %v187
    %v859 = vunpack.c.l.b16 %v188
    %v860 = vunpack.c.h.b16 %v188
    %v861 = vunpack.c.l.b16 %v189
    %v862 = vunpack.c.h.b16 %v189
    %v863 = vunpack.c.l.b16 %v190
    %v864 = vunpack.c.h.b16 %v190
    %v865 = vunpack.c.l.b16 %v191
    %v866 = vunpack.c.h.b16 %v191
    %v867 = vunpack.c.l.b16 %v192
    %v868 = vunpack.c.h.b16 %v192
    %v869 = vunpack.c.l.b16 %v193
    %v870 = vunpack.c.h.b16 %v193
    %v871 = vunpack.c.l.b16 %v194
    %v872 = vunpack.c.h.b16 %v194
    %v873 = vunpack.c.l.b16 %v195
    %v874 = vunpack.c.h.b16 %v195
    %v875 = vunpack.c.l.b16 %v196
    %v876 = vunpack.c.h.b16 %v196
    %v877 = vunpack.c.l.b16 %v197
    %v878 = vunpack.c.h.b16 %v197
    %v879 = vunpack.c.l.b16 %v198
    %v880 = vunpack.c.h.b16 %v198
    %v881 = vunpack.c.l.b16 %v199
    %v882 = vunpack.c.h.b16 %v199
    %v883 = vunpack.c.l.b16 %v200
    %v884 = vunpack.c.h.b16 %v200
    %v885 = vunpack.c.l.b16 %v201
    %v886 = vunpack.c.h.b16 %v201
    %v887 = vunpack.c.l.b16 %v202
    %v888 = vunpack.c.h.b16 %v202
    %v889 = vunpack.c.l.b16 %v203
    %v890 = vunpack.c.h.b16 %v203
    %v891 = vunpack.c.l.b16 %v204
    %v892 = vunpack.c.h.b16 %v204
    %v893 = vunpack.c.l.b16 %v205
    %v894 = vunpack.c.h.b16 %v205
    %v895 = vunpack.c.l.b16 %v206
    %v896 = vunpack.c.h.b16 %v206
    %v897 = vunpack.c.l.b16 %v207
    %v898 = vunpack.c.h.b16 %v207
    %v899 = vunpack.c.l.b16 %v208
    %v900 = vunpack.c.h.b16 %v208
    %v901 = vunpack.c.l.b16 %v209
    %v902 = vunpack.c.h.b16 %v209
    %v903 = vunpack.c.l.b16 %v210
    %v904 = vunpack.c.h.b16 %v210
    %v905 = vunpack.c.l.b16 %v211
    %v906 = vunpack.c.h.b16 %v211
    %v907 = vunpack.c.l.b16 %v212
    %v908 = vunpack.c.h.b16 %v212
    %v909 = vunpack.c.l.b16 %v213
    %v910 = vunpack.c.h.b16 %v213
    %v911 = vunpack.c.l.b16 %v214
    %v912 = vunpack.c.h.b16 %v214
    %v913 = vunpack.c.l.b16 %v215
    %v914 = vunpack.c.h.b16 %v215
    %v915 = vunpack.c.l.b16 %v216
    %v916 = vunpack.c.h.b16 %v216
    %v917 = vunpack.c.l.b16 %v217
    %v918 = vunpack.c.h.b16 %v217
    %v919 = vunpack.c.l.b16 %v218
    %v920 = vunpack.c.h.b16 %v218
    %v921 = vunpack.c.l.b16 %v219
    %v922 = vunpack.c.h.b16 %v219
    %v923 = vunpack.c.l.b16 %v220
    %v924 = vunpack.c.h.b16 %v220
    %v925 = vunpack.c.l.b16 %v221
    %v926 = vunpack.c.h.b16 %v221
    %v927 = vunpack.c.l.b16 %v222
    %v928 = vunpack.c.h.b16 %v222
    %v929 = vunpack.c.l.b16 %v223
    %v930 = vunpack.c.h.b16 %v223
    %v931 = vunpack.c.l.b16 %v224
    %v932 = vunpack.c.h.b16 %v224
    %v933 = vunpack.c.l.b16 %v225
    %v934 = vunpack.c.h.b16 %v225
    %v935 = vunpack.c.l.b16 %v226
    %v936 = vunpack.c.h.b16 %v226
    %v937 = vunpack.c.l.b16 %v227
    %v938 = vunpack.c.h.b16 %v227
    %v939 = vunpack.c.l.b16 %v228
    %v940 = vunpack.c.h.b16 %v228
    %v941 = vunpack.c.l.b16 %v229
    %v942 = vunpack.c.h.b16 %v229
    %v943 = vunpack.c.l.b16 %v230
    %v944 = vunpack.c.h.b16 %v230
    %v945 = vunpack.c.l.b16 %v231
    %v946 = vunpack.c.h.b16 %v231
    %v947 = vunpack.c.l.b16 %v232
    %v948 = vunpack.c.h.b16 %v232
    %v949 = vunpack.c.l.b16 %v233
    %v950 = vunpack.c.h.b16 %v233
    %v951 = vunpack.c.l.b16 %v234
    %v952 = vunpack.c.h.b16 %v234
    %v953 = vunpack.c.l.b16 %v235
    %v954 = vunpack.c.h.b16 %v235
    %v955 = vunpack.c.l.b16 %v236
    %v956 = vunpack.c.h.b16 %v236
    %v957 = vunpack.c.l.b16 %v237
    %v958 = vunpack.c.h.b16 %v237
    %v959 = vunpack.c.l.b16 %v238
    %v960 = vunpack.c.h.b16 %v238
    %v961 = vunpack.c.l.b16 %v239
    %v962 = vunpack.c.h.b16 %v239
    %v963 = vunpack.c.l.b16 %v240
    %v964 = vunpack.c.h.b16 %v240
    %v965 = vunpack.c.l.b16 %v241
    %v966 = vunpack.c.h.b16 %v241
    %v967 = vunpack.c.l.b16 %v242
    %v968 = vunpack.c.h.b16 %v242
    %v969 = vunpack.c.l.b16 %v243
    %v970 = vunpack.c.h.b16 %v243
    %v971 = vunpack.c.l.b16 %v244
    %v972 = vunpack.c.h.b16 %v244
    %v973 = vunpack.c.l.b16 %v245
    %v974 = vunpack.c.h.b16 %v245
    %v975 = vunpack.c.l.b16 %v246
    %v976 = vunpack.c.h.b16 %v246
    %v977 = vunpack.c.l.b16 %v247
    %v978 = vunpack.c.h.b16 %v247
    %v979 = vunpack.c.l.b16 %v248
    %v980 = vunpack.c.h.b16 %v248
    %v981 = vunpack.c.l.b16 %v249
    %v982 = vunpack.c.h.b16 %v249
    %v983 = vunpack.c.l.b16 %v250
    %v984 = vunpack.c.h.b16 %v250
    %v985 = vunpack.c.l.b16 %v251
    %v986 = vunpack.c.h.b16 %v251
    %v987 = vunpack.c.l.b16 %v252
    %v988 = vunpack.c.h.b16 %v252
    %v989 = vunpack.c.l.b16 %v253
    %v990 = vunpack.c.h.b16 %v253
    %v991 = vunpack.c.l.b16 %v254
    %v992 = vunpack.c.h.b16 %v254
    %v993 = vunpack.c.l.b16 %v255
    %v994 = vunpack.c.h.b16 %v255
    %v995 = vunpack.c.l.b16 %v256
    %v996 = vunpack.c.h.b16 %v256
    %v997 = vunpack.c.l.b16 %v257
    %v998 = vunpack.c.h.b16 %v257
    %v999 = vunpack.c.l.b16 %v258
    %v1000 = vunpack.c.h.b16 %v258
    %v1001 = vunpack.c.l.b16 %v259
    %v1002 = vunpack.c.h.b16 %v259
    %v1003 = vunpack.c.l.b16 %v260
    %v1004 = vunpack.c.h.b16 %v260
    %v1005 = vunpack.c.l.b16 %v261
    %v1006 = vunpack.c.h.b16 %v261
    %v1007 = vunpack.c.l.b16 %v262
    %v1008 = vunpack.c.h.b16 %v262
    %v1009 = vunpack.c.l.b16 %v263
    %v1010 = vunpack.c.h.b16 %v263
    %v1011 = vunpack.c.l.b16 %v264
    %v1012 = vunpack.c.h.b16 %v264
    %v1013 = vunpack.c.l.b16 %v265
    %v1014 = vunpack.c.h.b16 %v265
    %v1015 = vunpack.c.l.b16 %v266
    %v1016 = vunpack.c.h.b16 %v266
    %v1017 = vpack.c.b16 %v573, %v569
    %v1018 = vpack.c.b16 %v574, %v570
    %v1019 = vpack.c.b16 %v575, %v571
    %v1020 = vpack.c.b16 %v576, %v572
    %v1021 = vpack.c.b16 %v581, %v577
    %v1022 = vpack.c.b16 %v582, %v578
    %v1023 = vpack.c.b16 %v583, %v579
    %v1024 = vpack.c.b16 %v584, %v580
    %v1025 = vpack.c.b16 %v589, %v585
    %v1026 = vpack.c.b16 %v590, %v586
    %v1027 = vpack.c.b16 %v591, %v587
    %v1028 = vpack.c.b16 %v592, %v588
    %v1029 = vpack.c.b16 %v597, %v593
    %v1030 = vpack.c.b16 %v598, %v594
    %v1031 = vpack.c.b16 %v599, %v595
    %v1032 = vpack.c.b16 %v600, %v596
    %v1033 = vpack.c.b16 %v605, %v601
    %v1034 = vpack.c.b16 %v606, %v602
    %v1035 = vpack.c.b16 %v607, %v603
    %v1036 = vpack.c.b16 %v608, %v604
    %v1037 = vpack.c.b16 %v613, %v609
    %v1038 = vpack.c.b16 %v614, %v610
    %v1039 = vpack.c.b16 %v615, %v611
    %v1040 = vpack.c.b16 %v616, %v612
    %v1041 = vpack.c.b16 %v621, %v617
    %v1042 = vpack.c.b16 %v622, %v618
    %v1043 = vpack.c.b16 %v623, %v619
    %v1044 = vpack.c.b16 %v624, %v620
    %v1045 = vpack.c.b16 %v629, %v625
    %v1046 = vpack.c.b16 %v630, %v626
    %v1047 = vpack.c.b16 %v631, %v627
    %v1048 = vpack.c.b16 %v632, %v628
    %v1049 = vpack.c.b16 %v637, %v633
    %v1050 = vpack.c.b16 %v638, %v634
    %v1051 = vpack.c.b16 %v639, %v635
    %v1052 = vpack.c.b16 %v640, %v636
    %v1053 = vpack.c.b16 %v645, %v641
    %v1054 = vpack.c.b16 %v646, %v642
    %v1055 = vpack.c.b16 %v647, %v643
    %v1056 = vpack.c.b16 %v648, %v644
    %v1057 = vpack.c.b16 %v653, %v649
    %v1058 = vpack.c.b16 %v654, %v650
    %v1059 = vpack.c.b16 %v655, %v651
    %v1060 = vpack.c.b16 %v656, %v652
    %v1061 = vpack.c.b16 %v661, %v657
    %v1062 = vpack.c.b16 %v662, %v658
    %v1063 = vpack.c.b16 %v663, %v659
    %v1064 = vpack.c.b16 %v664, %v660
    %v1065 = vpack.c.b16 %v669, %v665
    %v1066 = vpack.c.b16 %v670, %v666
    %v1067 = vpack.c.b16 %v671, %v667
    %v1068 = vpack.c.b16 %v672, %v668
    %v1069 = vpack.c.b16 %v677, %v673
    %v1070 = vpack.c.b16 %v678, %v674
    %v1071 = vpack.c.b16 %v679, %v675
    %v1072 = vpack.c.b16 %v680, %v676
    %v1073 = vpack.c.b16 %v685, %v681
    %v1074 = vpack.c.b16 %v686, %v682
    %v1075 = vpack.c.b16 %v687, %v683
    %v1076 = vpack.c.b16 %v688, %v684
    %v1077 = vpack.c.b16 %v693, %v689
    %v1078 = vpack.c.b16 %v694, %v690
    %v1079 = vpack.c.b16 %v695, %v691
    %v1080 = vpack.c.b16 %v696, %v692
    %v1081 = vpack.c.b16 %v701, %v697
    %v1082 = vpack.c.b16 %v702, %v698
    %v1083 = vpack.c.b16 %v703, %v699
    %v1084 = vpack.c.b16 %v704, %v700
    %v1085 = vpack.c.b16 %v709, %v705
    %v1086 = vpack.c.b16 %v710, %v706
    %v1087 = vpack.c.b16 %v711, %v707
    %v1088 = vpack.c.b16 %v712, %v708
    %v1089 = vpack.c.b16 %v717, %v713
    %v1090 = vpack.c.b16 %v718, %v714
    %v1091 = vpack.c.b16 %v719, %v715
    %v1092 = vpack.c.b16 %v720, %v716
    %v1093 = vpack.c.b16 %v725, %v721
    %v1094 = vpack.c.b16 %v726, %v722
    %v1095 = vpack.c.b16 %v727, %v723
    %v1096 = vpack.c.b16 %v728, %v724
    %v1097 = vpack.c.b16 %v733, %v729
    %v1098 = vpack.c.b16 %v734, %v730
    %v1099 = vpack.c.b16 %v735, %v731
    %v1100 = vpack.c.b16 %v736, %v732
    %v1101 = vpack.c.b16 %v741, %v737
    %v1102 = vpack.c.b16 %v742, %v738
    %v1103 = vpack.c.b16 %v743, %v739
    %v1104 = vpack.c.b16 %v744, %v740
    %v1105 = vpack.c.b16 %v749, %v745
    %v1106 = vpack.c.b16 %v750, %v746
    %v1107 = vpack.c.b16 %v751, %v747
    %v1108 = vpack.c.b16 %v752, %v748
    %v1109 = vpack.c.b16 %v757, %v753
    %v1110 = vpack.c.b16 %v758, %v754
    %v1111 = vpack.c.b16 %v759, %v755
    %v1112 = vpack.c.b16 %v760, %v756
    %v1113 = vpack.c.b16 %v765, %v761
    %v1114 = vpack.c.b16 %v766, %v762
    %v1115 = vpack.c.b16 %v767, %v763
    %v1116 = vpack.c.b16 %v768, %v764
    %v1117 = vpack.c.b16 %v773, %v769
    %v1118 = vpack.c.b16 %v774, %v770
    %v1119 = vpack.c.b16 %v775, %v771
    %v1120 = vpack.c.b16 %v776, %v772
    %v1121 = vpack.c.b16 %v781, %v777
    %v1122 = vpack.c.b16 %v782, %v778
    %v1123 = vpack.c.b16 %v783, %v779
    %v1124 = vpack.c.b16 %v784, %v780
    %v1125 = vpack.c.b16 %v789, %v785
    %v1126 = vpack.c.b16 %v790, %v786
    %v1127 = vpack.c.b16 %v791, %v787
    %v1128 = vpack.c.b16 %v792, %v788
    %v1129 = vpack.c.b16 %v797, %v793
    %v1130 = vpack.c.b16 %v798, %v794
    %v1131 = vpack.c.b16 %v799, %v795
    %v1132 = vpack.c.b16 %v800, %v796
    %v1133 = vpack.c.b16 %v805, %v801
    %v1134 = vpack.c.b16 %v806, %v802
    %v1135 = vpack.c.b16 %v807, %v803
    %v1136 = vpack.c.b16 %v808, %v804
    %v1137 = vpack.c.b16 %v813, %v809
    %v1138 = vpack.c.b16 %v814, %v810
    %v1139 = vpack.c.b16 %v815, %v811
    %v1140 = vpack.c.b16 %v816, %v812
    %v1141 = vpack.c.b16 %v821, %v817
    %v1142 = vpack.c.b16 %v822, %v818
    %v1143 = vpack.c.b16 %v823, %v819
    %v1144 = vpack.c.b16 %v824, %v820
    %v1145 = vpack.c.b16 %v829, %v825
    %v1146 = vpack.c.b16 %v830, %v826
    %v1147 = vpack.c.b16 %v831, %v827
    %v1148 = vpack.c.b16 %v832, %v828
    %v1149 = vpack.c.b16 %v837, %v833
    %v1150 = vpack.c.b16 %v838, %v834
    %v1151 = vpack.c.b16 %v839, %v835
    %v1152 = vpack.c.b16 %v840, %v836
    %v1153 = vpack.c.b16 %v845, %v841
    %v1154 = vpack.c.b16 %v846, %v842
    %v1155 = vpack.c.b16 %v847, %v843
    %v1156 = vpack.c.b16 %v848, %v844
    %v1157 = vpack.c.b16 %v853, %v849
    %v1158 = vpack.c.b16 %v854, %v850
    %v1159 = vpack.c.b16 %v855, %v851
    %v1160 = vpack.c.b16 %v856, %v852
    %v1161 = vpack.c.b16 %v861, %v857
    %v1162 = vpack.c.b16 %v862, %v858
    %v1163 = vpack.c.b16 %v863, %v859
    %v1164 = vpack.c.b16 %v864, %v860
    %v1165 = vpack.c.b16 %v869, %v865
    %v1166 = vpack.c.b16 %v870, %v866
    %v1167 = vpack.c.b16 %v871, %v867
    %v1168 = vpack.c.b16 %v872, %v868
    %v1169 = vpack.c.b16 %v877, %v873
    %v1170 = vpack.c.b16 %v878, %v874
    %v1171 = vpack.c.b16 %v879, %v875
    %v1172 = vpack.c.b16 %v880, %v876
    %v1173 = vpack.c.b16 %v885, %v881
    %v1174 = vpack.c.b16 %v886, %v882
    %v1175 = vpack.c.b16 %v887, %v883
    %v1176 = vpack.c.b16 %v888, %v884
    %v1177 = vpack.c.b16 %v893, %v889
    %v1178 = vpack.c.b16 %v894, %v890
    %v1179 = vpack.c.b16 %v895, %v891
    %v1180 = vpack.c.b16 %v896, %v892
    %v1181 = vpack.c.b16 %v901, %v897
    %v1182 = vpack.c.b16 %v902, %v898
    %v1183 = vpack.c.b16 %v903, %v899
    %v1184 = vpack.c.b16 %v904, %v900
    %v1185 = vpack.c.b16 %v909, %v905
    %v1186 = vpack.c.b16 %v910, %v906
    %v1187 = vpack.c.b16 %v911, %v907
    %v1188 = vpack.c.b16 %v912, %v908
    %v1189 = vpack.c.b16 %v917, %v913
    %v1190 = vpack.c.b16 %v918, %v914
    %v1191 = vpack.c.b16 %v919, %v915
    %v1192 = vpack.c.b16 %v920, %v916
    %v1193 = vpack.c.b16 %v925, %v921
    %v1194 = vpack.c.b16 %v926, %v922
    %v1195 = vpack.c.b16 %v927, %v923
    %v1196 = vpack.c.b16 %v928, %v924
    %v1197 = vpack.c.b16 %v933, %v929
    %v1198 = vpack.c.b16 %v934, %v930
    %v1199 = vpack.c.b16 %v935, %v931
    %v1200 = vpack.c.b16 %v936, %v932
    %v1201 = vpack.c.b16 %v941, %v937
    %v1202 = vpack.c.b16 %v942, %v938
    %v1203 = vpack.c.b16 %v943, %v939
    %v1204 = vpack.c.b16 %v944, %v940
    %v1205 = vpack.c.b16 %v949, %v945
    %v1206 = vpack.c.b16 %v950, %v946
    %v1207 = vpack.c.b16 %v951, %v947
    %v1208 = vpack.c.b16 %v952, %v948
    %v1209 = vpack.c.b16 %v957, %v953
    %v1210 = vpack.c.b16 %v958, %v954
    %v1211 = vpack.c.b16 %v959, %v955
    %v1212 = vpack.c.b16 %v960, %v956
    %v1213 = vpack.c.b16 %v965, %v961
    %v1214 = vpack.c.b16 %v966, %v962
    %v1215 = vpack.c.b16 %v967, %v963
    %v1216 = vpack.c.b16 %v968, %v964
    %v1217 = vpack.c.b16 %v973, %v969
    %v1218 = vpack.c.b16 %v974, %v970
    %v1219 = vpack.c.b16 %v975, %v971
    %v1220 = vpack.c.b16 %v976, %v972
    %v1221 = vpack.c.b16 %v981, %v977
    %v1222 = vpack.c.b16 %v982, %v978
    %v1223 = vpack.c.b16 %v983, %v979
    %v1224 = vpack.c.b16 %v984, %v980
    %v1225 = vpack.c.b16 %v989, %v985
    %v1226 = vpack.c.b16 %v990, %v986
    %v1227 = vpack.c.b16 %v991, %v987
    %v1228 = vpack.c.b16 %v992, %v988
    %v1229 = vpack.c.b16 %v997, %v993
    %v1230 = vpack.c.b16 %v998, %v994
    %v1231 = vpack.c.b16 %v999, %v995
    %v1232 = vpack.c.b16 %v1000, %v996
    %v1233 = vpack.c.b16 %v1005, %v1001
    %v1234 = vpack.c.b16 %v1006, %v1002
    %v1235 = vpack.c.b16 %v1007, %v1003
    %v1236 = vpack.c.b16 %v1008, %v1004
    %v1237 = vpack.c.b16 %v1013, %v1009
    %v1238 = vpack.c.b16 %v1014, %v1010
    %v1239 = vpack.c.b16 %v1015, %v1011
    %v1240 = vpack.c.b16 %v1016, %v1012
    %1465 = vmatprep.subr.bf16.mxu0 %v1018
    %1466 = vmatpush1.bf16.msra.mxu0 %v1017
    %1467 = vmatprep.subr.bf16.mxu0 %v1022
    %1468 = vmatpush1.bf16.msra.mxu0 %v1021
    %1469 = vmatprep.subr.bf16.mxu0 %v1026
    %1470 = vmatpush1.bf16.msra.mxu0 %v1025
    %1471 = vmatprep.subr.bf16.mxu0 %v1030
    %1472 = vmatpush1.bf16.msra.mxu0 %v1029
    %1473 = vmatprep.subr.bf16.mxu0 %v1034
    %1474 = vmatpush1.bf16.msra.mxu0 %v1033
    %1475 = vmatprep.subr.bf16.mxu0 %v1038
    %1476 = vmatpush1.bf16.msra.mxu0 %v1037
    %1477 = vmatprep.subr.bf16.mxu0 %v1042
    %1478 = vmatpush1.bf16.msra.mxu0 %v1041
    %1479 = vmatprep.subr.bf16.mxu0 %v1046
    %1480 = vmatpush1.bf16.msra.mxu0 %v1045
    %1481 = vmatprep.subr.bf16.mxu0 %v1050
    %1482 = vmatpush1.bf16.msra.mxu0 %v1049
    %1483 = vmatprep.subr.bf16.mxu0 %v1054
    %1484 = vmatpush1.bf16.msra.mxu0 %v1053
    %1485 = vmatprep.subr.bf16.mxu0 %v1058
    %1486 = vmatpush1.bf16.msra.mxu0 %v1057
    %1487 = vmatprep.subr.bf16.mxu0 %v1062
    %1488 = vmatpush1.bf16.msra.mxu0 %v1061
    %1489 = vmatprep.subr.bf16.mxu0 %v1066
    %1490 = vmatpush1.bf16.msra.mxu0 %v1065
    %1491 = vmatprep.subr.bf16.mxu0 %v1070
    %1492 = vmatpush1.bf16.msra.mxu0 %v1069
    %1493 = vmatprep.subr.bf16.mxu0 %v1074
    %1494 = vmatpush1.bf16.msra.mxu0 %v1073
    %1495 = vmatprep.subr.bf16.mxu0 %v1078
    %1496 = vmatpush1.bf16.msra.mxu0 %v1077
    %1497 = vmatprep.mubr.bf16.mxu0 %v327
    %1498 = vmatmul.mubr.bf16.gmra.mrb[0].mxu0 %v313
    %v1499 = vpop.f32.mrb[0].mxu0
    %v1500 = vadd.f32 %v272, %v1499
    %v1501 = vpop.f32.mrb[0].mxu0
    %v1502 = vadd.f32 %v276, %v1501
    %v1503 = vpop.f32.mrb[0].mxu0
    %v1504 = vpop.f32.mrb[0].mxu0
    %1505 = vdwg.mxu0
    %1506 = vmatprep.subr.bf16.mxu0 %v1082
    %1507 = vmatpush1.bf16.msra.mxu0 %v1081
    %1508 = vmatprep.subr.bf16.mxu0 %v1086
    %1509 = vmatpush1.bf16.msra.mxu0 %v1085
    %1510 = vmatprep.subr.bf16.mxu0 %v1090
    %1511 = vmatpush1.bf16.msra.mxu0 %v1089
    %1512 = vmatprep.subr.bf16.mxu0 %v1094
    %1513 = vmatpush1.bf16.msra.mxu0 %v1093
    %1514 = vmatprep.subr.bf16.mxu0 %v1098
    %1515 = vmatpush1.bf16.msra.mxu0 %v1097
    %1516 = vmatprep.subr.bf16.mxu0 %v1102
    %1517 = vmatpush1.bf16.msra.mxu0 %v1101
    %1518 = vmatprep.subr.bf16.mxu0 %v1106
    %1519 = vmatpush1.bf16.msra.mxu0 %v1105
    %1520 = vmatprep.subr.bf16.mxu0 %v1110
    %1521 = vmatpush1.bf16.msra.mxu0 %v1109
    %1522 = vmatprep.subr.bf16.mxu0 %v1114
    %1523 = vmatpush1.bf16.msra.mxu0 %v1113
    %1524 = vmatprep.subr.bf16.mxu0 %v1118
    %1525 = vmatpush1.bf16.msra.mxu0 %v1117
    %1526 = vmatprep.subr.bf16.mxu0 %v1122
    %1527 = vmatpush1.bf16.msra.mxu0 %v1121
    %1528 = vmatprep.subr.bf16.mxu0 %v1126
    %1529 = vmatpush1.bf16.msra.mxu0 %v1125
    %1530 = vmatprep.subr.bf16.mxu0 %v1130
    %1531 = vmatpush1.bf16.msra.mxu0 %v1129
    %1532 = vmatprep.subr.bf16.mxu0 %v1134
    %1533 = vmatpush1.bf16.msra.mxu0 %v1133
    %1534 = vmatprep.subr.bf16.mxu0 %v1138
    %1535 = vmatpush1.bf16.msra.mxu0 %v1137
    %1536 = vmatprep.subr.bf16.mxu0 %v1142
    %1537 = vmatpush1.bf16.msra.mxu0 %v1141
    %1538 = vmatprep.mubr.bf16.mxu0 %v337
    %1539 = vmatmul.mubr.bf16.gmra.mrb[0].mxu0 %v335
    %v1540 = vpop.f32.mrb[0].mxu0
    %v1541 = vadd.f32 %v1500, %v1540
    %v1542 = vpop.f32.mrb[0].mxu0
    %v1543 = vadd.f32 %v1502, %v1542
    %v1544 = vpop.f32.mrb[0].mxu0
    %v1545 = vpop.f32.mrb[0].mxu0
    %1546 = vdwg.mxu0
    %1547 = vmatprep.subr.bf16.mxu0 %v1146
    %1548 = vmatpush1.bf16.msra.mxu0 %v1145
    %1549 = vmatprep.subr.bf16.mxu0 %v1150
    %1550 = vmatpush1.bf16.msra.mxu0 %v1149
    %1551 = vmatprep.subr.bf16.mxu0 %v1154
    %1552 = vmatpush1.bf16.msra.mxu0 %v1153
    %1553 = vmatprep.subr.bf16.mxu0 %v1158
    %1554 = vmatpush1.bf16.msra.mxu0 %v1157
    %1555 = vmatprep.subr.bf16.mxu0 %v1162
    %1556 = vmatpush1.bf16.msra.mxu0 %v1161
    %1557 = vmatprep.subr.bf16.mxu0 %v1166
    %1558 = vmatpush1.bf16.msra.mxu0 %v1165
    %1559 = vmatprep.subr.bf16.mxu0 %v1170
    %1560 = vmatpush1.bf16.msra.mxu0 %v1169
    %1561 = vmatprep.subr.bf16.mxu0 %v1174
    %1562 = vmatpush1.bf16.msra.mxu0 %v1173
    %1563 = vmatprep.subr.bf16.mxu0 %v1178
    %1564 = vmatpush1.bf16.msra.mxu0 %v1177
    %1565 = vmatprep.subr.bf16.mxu0 %v1182
    %1566 = vmatpush1.bf16.msra.mxu0 %v1181
    %1567 = vmatprep.subr.bf16.mxu0 %v1186
    %1568 = vmatpush1.bf16.msra.mxu0 %v1185
    %1569 = vmatprep.subr.bf16.mxu0 %v1190
    %1570 = vmatpush1.bf16.msra.mxu0 %v1189
    %1571 = vmatprep.subr.bf16.mxu0 %v1194
    %1572 = vmatpush1.bf16.msra.mxu0 %v1193
    %1573 = vmatprep.subr.bf16.mxu0 %v1198
    %1574 = vmatpush1.bf16.msra.mxu0 %v1197
    %1575 = vmatprep.subr.bf16.mxu0 %v1202
    %1576 = vmatpush1.bf16.msra.mxu0 %v1201
    %1577 = vmatprep.subr.bf16.mxu0 %v1206
    %1578 = vmatpush1.bf16.msra.mxu0 %v1205
    %1579 = vmatprep.mubr.bf16.mxu0 %v334
    %1580 = vmatmul.mubr.bf16.gmra.mrb[0].mxu0 %v320
    %v1581 = vpop.f32.mrb[0].mxu0
    %v1582 = vadd.f32 %v1541, %v1581
    %v1583 = vpop.f32.mrb[0].mxu0
    %v1584 = vadd.f32 %v1543, %v1583
    %v1585 = vpop.f32.mrb[0].mxu0
    %v1586 = vpop.f32.mrb[0].mxu0
    %1587 = vdwg.mxu0
    %1588 = vmatprep.subr.bf16.mxu0 %v1210
    %1589 = vmatpush1.bf16.msra.mxu0 %v1209
    %1590 = vmatprep.subr.bf16.mxu0 %v1214
    %1591 = vmatpush1.bf16.msra.mxu0 %v1213
    %1592 = vmatprep.subr.bf16.mxu0 %v1218
    %1593 = vmatpush1.bf16.msra.mxu0 %v1217
    %1594 = vmatprep.subr.bf16.mxu0 %v1222
    %1595 = vmatpush1.bf16.msra.mxu0 %v1221
    %1596 = vmatprep.subr.bf16.mxu0 %v1226
    %1597 = vmatpush1.bf16.msra.mxu0 %v1225
    %1598 = vmatprep.subr.bf16.mxu0 %v1230
    %1599 = vmatpush1.bf16.msra.mxu0 %v1229
    %1600 = vmatprep.subr.bf16.mxu0 %v1234
    %1601 = vmatpush1.bf16.msra.mxu0 %v1233
    %1602 = vmatprep.subr.bf16.mxu0 %v1238
    %1603 = vmatpush1.bf16.msra.mxu0 %v1237
    %1604 = vmatprep.subr.bf16.mxu0 0
    %1605 = vmatpush1.bf16.msra.mxu0 0
    %1606 = vmatprep.subr.bf16.mxu0 0
    %1607 = vmatpush1.bf16.msra.mxu0 0
    %1608 = vmatprep.subr.bf16.mxu0 0
    %1609 = vmatpush1.bf16.msra.mxu0 0
    %1610 = vmatprep.subr.bf16.mxu0 0
    %1611 = vmatpush1.bf16.msra.mxu0 0
    %1612 = vmatprep.subr.bf16.mxu0 0
    %1613 = vmatpush1.bf16.msra.mxu0 0
    %1614 = vmatprep.subr.bf16.mxu0 0
    %1615 = vmatpush1.bf16.msra.mxu0 0
    %1616 = vmatprep.subr.bf16.mxu0 0
    %1617 = vmatpush1.bf16.msra.mxu0 0
    %1618 = vmatprep.subr.bf16.mxu0 0
    %1619 = vmatpush1.bf16.msra.mxu0 0
    %1620 = vmatprep.mubr.bf16.mxu0 0
    %1621 = vmatmul.mubr.bf16.gmra.mrb[0].mxu0 %v336
    %v1622 = vpop.f32.mrb[0].mxu0
    %v1623 = vadd.f32 %v1582, %v1622
    %v1624 = vpop.f32.mrb[0].mxu0
    %v1625 = vadd.f32 %v1584, %v1624
    %v1626 = vpop.f32.mrb[0].mxu0
    %v1627 = vpop.f32.mrb[0].mxu0
    %1628 = vdwg.mxu0
    %1629 = vmatprep.subr.bf16.mxu0 %v1020
    %1630 = vmatpush1.bf16.msra.mxu0 %v1019
    %1631 = vmatprep.subr.bf16.mxu0 %v1024
    %1632 = vmatpush1.bf16.msra.mxu0 %v1023
    %1633 = vmatprep.subr.bf16.mxu0 %v1028
    %1634 = vmatpush1.bf16.msra.mxu0 %v1027
    %1635 = vmatprep.subr.bf16.mxu0 %v1032
    %1636 = vmatpush1.bf16.msra.mxu0 %v1031
    %1637 = vmatprep.subr.bf16.mxu0 %v1036
    %1638 = vmatpush1.bf16.msra.mxu0 %v1035
    %1639 = vmatprep.subr.bf16.mxu0 %v1040
    %1640 = vmatpush1.bf16.msra.mxu0 %v1039
    %1641 = vmatprep.subr.bf16.mxu0 %v1044
    %1642 = vmatpush1.bf16.msra.mxu0 %v1043
    %1643 = vmatprep.subr.bf16.mxu0 %v1048
    %1644 = vmatpush1.bf16.msra.mxu0 %v1047
    %1645 = vmatprep.subr.bf16.mxu0 %v1052
    %1646 = vmatpush1.bf16.msra.mxu0 %v1051
    %1647 = vmatprep.subr.bf16.mxu0 %v1056
    %1648 = vmatpush1.bf16.msra.mxu0 %v1055
    %1649 = vmatprep.subr.bf16.mxu0 %v1060
    %1650 = vmatpush1.bf16.msra.mxu0 %v1059
    %1651 = vmatprep.subr.bf16.mxu0 %v1064
    %1652 = vmatpush1.bf16.msra.mxu0 %v1063
    %1653 = vmatprep.subr.bf16.mxu0 %v1068
    %1654 = vmatpush1.bf16.msra.mxu0 %v1067
    %1655 = vmatprep.subr.bf16.mxu0 %v1072
    %1656 = vmatpush1.bf16.msra.mxu0 %v1071
    %1657 = vmatprep.subr.bf16.mxu0 %v1076
    %1658 = vmatpush1.bf16.msra.mxu0 %v1075
    %1659 = vmatprep.subr.bf16.mxu0 %v1080
    %1660 = vmatpush1.bf16.msra.mxu0 %v1079
    %1661 = vmatprep.mubr.bf16.mxu0 %v327
    %1662 = vmatmul.mubr.bf16.gmra.mrb[0].mxu0 %v313
    %v1663 = vpop.f32.mrb[0].mxu0
    %v1664 = vadd.f32 %v280, %v1663
    %v1665 = vpop.f32.mrb[0].mxu0
    %v1666 = vadd.f32 %v284, %v1665
    %v1667 = vpop.f32.mrb[0].mxu0
    %v1668 = vpop.f32.mrb[0].mxu0
    %1669 = vdwg.mxu0
    %1670 = vmatprep.subr.bf16.mxu0 %v1084
    %1671 = vmatpush1.bf16.msra.mxu0 %v1083
    %1672 = vmatprep.subr.bf16.mxu0 %v1088
    %1673 = vmatpush1.bf16.msra.mxu0 %v1087
    %1674 = vmatprep.subr.bf16.mxu0 %v1092
    %1675 = vmatpush1.bf16.msra.mxu0 %v1091
    %1676 = vmatprep.subr.bf16.mxu0 %v1096
    %1677 = vmatpush1.bf16.msra.mxu0 %v1095
    %1678 = vmatprep.subr.bf16.mxu0 %v1100
    %1679 = vmatpush1.bf16.msra.mxu0 %v1099
    %1680 = vmatprep.subr.bf16.mxu0 %v1104
    %1681 = vmatpush1.bf16.msra.mxu0 %v1103
    %1682 = vmatprep.subr.bf16.mxu0 %v1108
    %1683 = vmatpush1.bf16.msra.mxu0 %v1107
    %1684 = vmatprep.subr.bf16.mxu0 %v1112
    %1685 = vmatpush1.bf16.msra.mxu0 %v1111
    %1686 = vmatprep.subr.bf16.mxu0 %v1116
    %1687 = vmatpush1.bf16.msra.mxu0 %v1115
    %1688 = vmatprep.subr.bf16.mxu0 %v1120
    %1689 = vmatpush1.bf16.msra.mxu0 %v1119
    %1690 = vmatprep.subr.bf16.mxu0 %v1124
    %1691 = vmatpush1.bf16.msra.mxu0 %v1123
    %1692 = vmatprep.subr.bf16.mxu0 %v1128
    %1693 = vmatpush1.bf16.msra.mxu0 %v1127
    %1694 = vmatprep.subr.bf16.mxu0 %v1132
    %1695 = vmatpush1.bf16.msra.mxu0 %v1131
    %1696 = vmatprep.subr.bf16.mxu0 %v1136
    %1697 = vmatpush1.bf16.msra.mxu0 %v1135
    %1698 = vmatprep.subr.bf16.mxu0 %v1140
    %1699 = vmatpush1.bf16.msra.mxu0 %v1139
    %1700 = vmatprep.subr.bf16.mxu0 %v1144
    %1701 = vmatpush1.bf16.msra.mxu0 %v1143
    %1702 = vmatprep.mubr.bf16.mxu0 %v337
    %1703 = vmatmul.mubr.bf16.gmra.mrb[0].mxu0 %v335
    %v1704 = vpop.f32.mrb[0].mxu0
    %v1705 = vadd.f32 %v1664, %v1704
    %v1706 = vpop.f32.mrb[0].mxu0
    %v1707 = vadd.f32 %v1666, %v1706
    %v1708 = vpop.f32.mrb[0].mxu0
    %v1709 = vpop.f32.mrb[0].mxu0
    %1710 = vdwg.mxu0
    %1711 = vmatprep.subr.bf16.mxu0 %v1148
    %1712 = vmatpush1.bf16.msra.mxu0 %v1147
    %1713 = vmatprep.subr.bf16.mxu0 %v1152
    %1714 = vmatpush1.bf16.msra.mxu0 %v1151
    %1715 = vmatprep.subr.bf16.mxu0 %v1156
    %1716 = vmatpush1.bf16.msra.mxu0 %v1155
    %1717 = vmatprep.subr.bf16.mxu0 %v1160
    %1718 = vmatpush1.bf16.msra.mxu0 %v1159
    %1719 = vmatprep.subr.bf16.mxu0 %v1164
    %1720 = vmatpush1.bf16.msra.mxu0 %v1163
    %1721 = vmatprep.subr.bf16.mxu0 %v1168
    %1722 = vmatpush1.bf16.msra.mxu0 %v1167
    %1723 = vmatprep.subr.bf16.mxu0 %v1172
    %1724 = vmatpush1.bf16.msra.mxu0 %v1171
    %1725 = vmatprep.subr.bf16.mxu0 %v1176
    %1726 = vmatpush1.bf16.msra.mxu0 %v1175
    %1727 = vmatprep.subr.bf16.mxu0 %v1180
    %1728 = vmatpush1.bf16.msra.mxu0 %v1179
    %1729 = vmatprep.subr.bf16.mxu0 %v1184
    %1730 = vmatpush1.bf16.msra.mxu0 %v1183
    %1731 = vmatprep.subr.bf16.mxu0 %v1188
    %1732 = vmatpush1.bf16.msra.mxu0 %v1187
    %1733 = vmatprep.subr.bf16.mxu0 %v1192
    %1734 = vmatpush1.bf16.msra.mxu0 %v1191
    %1735 = vmatprep.subr.bf16.mxu0 %v1196
    %1736 = vmatpush1.bf16.msra.mxu0 %v1195
    %1737 = vmatprep.subr.bf16.mxu0 %v1200
    %1738 = vmatpush1.bf16.msra.mxu0 %v1199
    %1739 = vmatprep.subr.bf16.mxu0 %v1204
    %1740 = vmatpush1.bf16.msra.mxu0 %v1203
    %1741 = vmatprep.subr.bf16.mxu0 %v1208
    %1742 = vmatpush1.bf16.msra.mxu0 %v1207
    %1743 = vmatprep.mubr.bf16.mxu0 %v334
    %1744 = vmatmul.mubr.bf16.gmra.mrb[0].mxu0 %v320
    %v1745 = vpop.f32.mrb[0].mxu0
    %v1746 = vadd.f32 %v1705, %v1745
    %v1747 = vpop.f32.mrb[0].mxu0
    %v1748 = vadd.f32 %v1707, %v1747
    %v1749 = vpop.f32.mrb[0].mxu0
    %v1750 = vpop.f32.mrb[0].mxu0
    %1751 = vdwg.mxu0
    %1752 = vmatprep.subr.bf16.mxu0 %v1212
    %1753 = vmatpush1.bf16.msra.mxu0 %v1211
    %1754 = vmatprep.subr.bf16.mxu0 %v1216
    %1755 = vmatpush1.bf16.msra.mxu0 %v1215
    %1756 = vmatprep.subr.bf16.mxu0 %v1220
    %1757 = vmatpush1.bf16.msra.mxu0 %v1219
    %1758 = vmatprep.subr.bf16.mxu0 %v1224
    %1759 = vmatpush1.bf16.msra.mxu0 %v1223
    %1760 = vmatprep.subr.bf16.mxu0 %v1228
    %1761 = vmatpush1.bf16.msra.mxu0 %v1227
    %1762 = vmatprep.subr.bf16.mxu0 %v1232
    %1763 = vmatpush1.bf16.msra.mxu0 %v1231
    %1764 = vmatprep.subr.bf16.mxu0 %v1236
    %1765 = vmatpush1.bf16.msra.mxu0 %v1235
    %1766 = vmatprep.subr.bf16.mxu0 %v1240
    %1767 = vmatpush1.bf16.msra.mxu0 %v1239
    %1768 = vmatprep.subr.bf16.mxu0 0
    %1769 = vmatpush1.bf16.msra.mxu0 0
    %1770 = vmatprep.subr.bf16.mxu0 0
    %1771 = vmatpush1.bf16.msra.mxu0 0
    %1772 = vmatprep.subr.bf16.mxu0 0
    %1773 = vmatpush1.bf16.msra.mxu0 0
    %1774 = vmatprep.subr.bf16.mxu0 0
    %1775 = vmatpush1.bf16.msra.mxu0 0
    %1776 = vmatprep.subr.bf16.mxu0 0
    %1777 = vmatpush1.bf16.msra.mxu0 0
    %1778 = vmatprep.subr.bf16.mxu0 0
    %1779 = vmatpush1.bf16.msra.mxu0 0
    %1780 = vmatprep.subr.bf16.mxu0 0
    %1781 = vmatpush1.bf16.msra.mxu0 0
    %1782 = vmatprep.subr.bf16.mxu0 0
    %1783 = vmatpush1.bf16.msra.mxu0 0
    %1784 = vmatprep.mubr.bf16.mxu0 0
    %1785 = vmatmul.mubr.bf16.gmra.mrb[0].mxu0 %v336
    %v1786 = vpop.f32.mrb[0].mxu0
    %v1787 = vadd.f32 %v1746, %v1786
    %v1788 = vpop.f32.mrb[0].mxu0
    %v1789 = vadd.f32 %v1748, %v1788
    %v1790 = vpop.f32.mrb[0].mxu0
    %v1791 = vpop.f32.mrb[0].mxu0
    %1792 = vdwg.mxu0
    %v1793 = vmax.f32 %v1623, 0.0
    %v1794 = vmax.f32 %v1625, 0.0
    %v1795 = vmax.f32 %v1787, 0.0
    %v1796 = vmax.f32 %v1789, 0.0
    %v1797 = vpack.c.bf16 %v1793, %v1793
    %v1798 = vpack.c.bf16 %v1794, %v1794
    %v1799 = vpack.c.bf16 %v1795, %v1795
    %v1800 = vpack.c.bf16 %v1796, %v1796
    %v1801 = vld [vmem:[%s3] sm:$0xf]
    %v1802 = vld [vmem:[%s3 + $0x4] sm:$0xf]
    %v1803 = vld [vmem:[%s3 + $0x8] sm:$0xf]
    %v1804 = vld [vmem:[%s3 + $0xc] sm:$0xf]
    %v1805 = vld [vmem:[%s3 + $0x10] sm:$0xf]
    %v1806 = vld [vmem:[%s3 + $0x14] sm:$0xf]
    %v1807 = vld [vmem:[%s3 + $0x18] sm:$0xf]
    %v1808 = vld [vmem:[%s3 + $0x1c] sm:$0xf]
    %v1809 = vld [vmem:[%s3 + $0x20] sm:$0xf]
    %v1810 = vld [vmem:[%s3 + $0x24] sm:$0xf]
    %v1811 = vld [vmem:[%s3 + $0x28] sm:$0xf]
    %v1812 = vld [vmem:[%s3 + $0x2c] sm:$0xf]
    %v1813 = vld [vmem:[%s3 + $0x30] sm:$0xf]
    %v1814 = vld [vmem:[%s3 + $0x34] sm:$0xf]
    %v1815 = vld [vmem:[%s3 + $0x38] sm:$0xf]
    %v1816 = vld [vmem:[%s3 + $0x3c] sm:$0xf]
    %v1817 = vld [vmem:[%s3 + $0x40] sm:$0xf]
    %v1818 = vld [vmem:[%s3 + $0x44] sm:$0xf]
    %v1819 = vld [vmem:[%s3 + $0x48] sm:$0xf]
    %v1820 = vld [vmem:[%s3 + $0x4c] sm:$0xf]
    %v1821 = vld [vmem:[%s3 + $0x50] sm:$0xf]
    %v1822 = vld [vmem:[%s3 + $0x54] sm:$0xf]
    %v1823 = vld [vmem:[%s3 + $0x58] sm:$0xf]
    %v1824 = vld [vmem:[%s3 + $0x5c] sm:$0xf]
    %v1825 = vld [vmem:[%s3 + $0x60] sm:$0xf]
    %v1826 = vld [vmem:[%s3 + $0x64] sm:$0xf]
    %v1827 = vld [vmem:[%s3 + $0x68] sm:$0xf]
    %v1828 = vld [vmem:[%s3 + $0x6c] sm:$0xf]
    %v1829 = vld [vmem:[%s3 + $0x70] sm:$0xf]
    %v1830 = vld [vmem:[%s3 + $0x74] sm:$0xf]
    %v1831 = vld [vmem:[%s3 + $0x78] sm:$0xf]
    %v1832 = vld [vmem:[%s3 + $0x7c] sm:$0xf]
    %v1833 = vld [vmem:[%s3 + $0x80] sm:$0xf]
    %v1834 = vld [vmem:[%s3 + $0x84] sm:$0xf]
    %v1835 = vld [vmem:[%s3 + $0x88] sm:$0xf]
    %v1836 = vld [vmem:[%s3 + $0x8c] sm:$0xf]
    %v1837 = vld [vmem:[%s3 + $0x90] sm:$0xf]
    %v1838 = vld [vmem:[%s3 + $0x94] sm:$0xf]
    %v1839 = vld [vmem:[%s3 + $0x98] sm:$0xf]
    %v1840 = vld [vmem:[%s3 + $0x9c] sm:$0xf]
    %v1841 = vld [vmem:[%s3 + $0xa0] sm:$0xf]
    %v1842 = vld [vmem:[%s3 + $0xa4] sm:$0xf]
    %v1843 = vld [vmem:[%s3 + $0xa8] sm:$0xf]
    %v1844 = vld [vmem:[%s3 + $0xac] sm:$0xf]
    %v1845 = vld [vmem:[%s3 + $0xb0] sm:$0xf]
    %v1846 = vld [vmem:[%s3 + $0xb4] sm:$0xf]
    %v1847 = vld [vmem:[%s3 + $0xb8] sm:$0xf]
    %v1848 = vld [vmem:[%s3 + $0xbc] sm:$0xf]
    %v1849 = vld [vmem:[%s3 + $0xc0] sm:$0xf]
    %v1850 = vld [vmem:[%s3 + $0xc4] sm:$0xf]
    %v1851 = vld [vmem:[%s3 + $0xc8] sm:$0xf]
    %v1852 = vld [vmem:[%s3 + $0xcc] sm:$0xf]
    %v1853 = vld [vmem:[%s3 + $0xd0] sm:$0xf]
    %v1854 = vld [vmem:[%s3 + $0xd4] sm:$0xf]
    %v1855 = vld [vmem:[%s3 + $0xd8] sm:$0xf]
    %v1856 = vld [vmem:[%s3 + $0xdc] sm:$0xf]
    %v1857 = vld [vmem:[%s3 + $0xe0] sm:$0xf]
    %v1858 = vld [vmem:[%s3 + $0xe4] sm:$0xf]
    %v1859 = vld [vmem:[%s3 + $0xe8] sm:$0xf]
    %v1860 = vld [vmem:[%s3 + $0xec] sm:$0xf]
    %v1861 = vld [vmem:[%s3 + $0xf0] sm:$0xf]
    %v1862 = vld [vmem:[%s3 + $0xf4] sm:$0xf]
    %v1863 = vld [vmem:[%s3 + $0xf8] sm:$0xf]
    %v1864 = vld [vmem:[%s3 + $0xfc] sm:$0xf]
    %v1865 = vld [vmem:[%s4] sm:$0x1]
    %v1867 = vlaneseq
    %v1868 = vshrl.u32 %v1867, 7
    %v1869 = vsub.s32 0, %v1868
    %v1870 = vrot.slane %v1865, %v1869
    %v1936 = vunpack.c.l.b16 %v1801
    %v1937 = vunpack.c.l.b16 %v1802
    %v1938 = vunpack.c.l.b16 %v1803
    %v1939 = vunpack.c.l.b16 %v1804
    %v1940 = vunpack.c.l.b16 %v1805
    %v1941 = vunpack.c.l.b16 %v1806
    %v1942 = vunpack.c.l.b16 %v1807
    %v1943 = vunpack.c.l.b16 %v1808
    %v1944 = vunpack.c.l.b16 %v1809
    %v1945 = vunpack.c.l.b16 %v1810
    %v1946 = vunpack.c.l.b16 %v1811
    %v1947 = vunpack.c.l.b16 %v1812
    %v1948 = vunpack.c.l.b16 %v1813
    %v1949 = vunpack.c.l.b16 %v1814
    %v1950 = vunpack.c.l.b16 %v1815
    %v1951 = vunpack.c.l.b16 %v1816
    %v1952 = vunpack.c.l.b16 %v1817
    %v1953 = vunpack.c.l.b16 %v1818
    %v1954 = vunpack.c.l.b16 %v1819
    %v1955 = vunpack.c.l.b16 %v1820
    %v1956 = vunpack.c.l.b16 %v1821
    %v1957 = vunpack.c.l.b16 %v1822
    %v1958 = vunpack.c.l.b16 %v1823
    %v1959 = vunpack.c.l.b16 %v1824
    %v1960 = vunpack.c.l.b16 %v1825
    %v1961 = vunpack.c.l.b16 %v1826
    %v1962 = vunpack.c.l.b16 %v1827
    %v1963 = vunpack.c.l.b16 %v1828
    %v1964 = vunpack.c.l.b16 %v1829
    %v1965 = vunpack.c.l.b16 %v1830
    %v1966 = vunpack.c.l.b16 %v1831
    %v1967 = vunpack.c.l.b16 %v1832
    %v1968 = vunpack.c.l.b16 %v1833
    %v1969 = vunpack.c.l.b16 %v1834
    %v1970 = vunpack.c.l.b16 %v1835
    %v1971 = vunpack.c.l.b16 %v1836
    %v1972 = vunpack.c.l.b16 %v1837
    %v1973 = vunpack.c.l.b16 %v1838
    %v1974 = vunpack.c.l.b16 %v1839
    %v1975 = vunpack.c.l.b16 %v1840
    %v1976 = vunpack.c.l.b16 %v1841
    %v1977 = vunpack.c.l.b16 %v1842
    %v1978 = vunpack.c.l.b16 %v1843
    %v1979 = vunpack.c.l.b16 %v1844
    %v1980 = vunpack.c.l.b16 %v1845
    %v1981 = vunpack.c.l.b16 %v1846
    %v1982 = vunpack.c.l.b16 %v1847
    %v1983 = vunpack.c.l.b16 %v1848
    %v1984 = vunpack.c.l.b16 %v1849
    %v1985 = vunpack.c.l.b16 %v1850
    %v1986 = vunpack.c.l.b16 %v1851
    %v1987 = vunpack.c.l.b16 %v1852
    %v1988 = vunpack.c.l.b16 %v1853
    %v1989 = vunpack.c.l.b16 %v1854
    %v1990 = vunpack.c.l.b16 %v1855
    %v1991 = vunpack.c.l.b16 %v1856
    %v1992 = vunpack.c.l.b16 %v1857
    %v1993 = vunpack.c.l.b16 %v1858
    %v1994 = vunpack.c.l.b16 %v1859
    %v1995 = vunpack.c.l.b16 %v1860
    %v1996 = vunpack.c.l.b16 %v1861
    %v1997 = vunpack.c.l.b16 %v1862
    %v1998 = vunpack.c.l.b16 %v1863
    %v1999 = vunpack.c.l.b16 %v1864
    %v2000 = vpack.c.b16 %v1937, %v1936
    %v2001 = vpack.c.b16 %v1939, %v1938
    %v2002 = vpack.c.b16 %v1941, %v1940
    %v2003 = vpack.c.b16 %v1943, %v1942
    %v2004 = vpack.c.b16 %v1945, %v1944
    %v2005 = vpack.c.b16 %v1947, %v1946
    %v2006 = vpack.c.b16 %v1949, %v1948
    %v2007 = vpack.c.b16 %v1951, %v1950
    %v2008 = vpack.c.b16 %v1953, %v1952
    %v2009 = vpack.c.b16 %v1955, %v1954
    %v2010 = vpack.c.b16 %v1957, %v1956
    %v2011 = vpack.c.b16 %v1959, %v1958
    %v2012 = vpack.c.b16 %v1961, %v1960
    %v2013 = vpack.c.b16 %v1963, %v1962
    %v2014 = vpack.c.b16 %v1965, %v1964
    %v2015 = vpack.c.b16 %v1967, %v1966
    %v2016 = vpack.c.b16 %v1969, %v1968
    %v2017 = vpack.c.b16 %v1971, %v1970
    %v2018 = vpack.c.b16 %v1973, %v1972
    %v2019 = vpack.c.b16 %v1975, %v1974
    %v2020 = vpack.c.b16 %v1977, %v1976
    %v2021 = vpack.c.b16 %v1979, %v1978
    %v2022 = vpack.c.b16 %v1981, %v1980
    %v2023 = vpack.c.b16 %v1983, %v1982
    %v2024 = vpack.c.b16 %v1985, %v1984
    %v2025 = vpack.c.b16 %v1987, %v1986
    %v2026 = vpack.c.b16 %v1989, %v1988
    %v2027 = vpack.c.b16 %v1991, %v1990
    %v2028 = vpack.c.b16 %v1993, %v1992
    %v2029 = vpack.c.b16 %v1995, %v1994
    %v2030 = vpack.c.b16 %v1997, %v1996
    %v2031 = vpack.c.b16 %v1999, %v1998
    %2064 = vmatprep.subr.bf16.mxu0 0
    %2065 = vmatpush1.bf16.msra.mxu0 %v2000
    %2066 = vmatprep.subr.bf16.mxu0 0
    %2067 = vmatpush1.bf16.msra.mxu0 %v2001
    %2068 = vmatprep.subr.bf16.mxu0 0
    %2069 = vmatpush1.bf16.msra.mxu0 %v2002
    %2070 = vmatprep.subr.bf16.mxu0 0
    %2071 = vmatpush1.bf16.msra.mxu0 %v2003
    %2072 = vmatprep.subr.bf16.mxu0 0
    %2073 = vmatpush1.bf16.msra.mxu0 %v2004
    %2074 = vmatprep.subr.bf16.mxu0 0
    %2075 = vmatpush1.bf16.msra.mxu0 %v2005
    %2076 = vmatprep.subr.bf16.mxu0 0
    %2077 = vmatpush1.bf16.msra.mxu0 %v2006
    %2078 = vmatprep.subr.bf16.mxu0 0
    %2079 = vmatpush1.bf16.msra.mxu0 %v2007
    %2080 = vmatprep.subr.bf16.mxu0 0
    %2081 = vmatpush1.bf16.msra.mxu0 %v2008
    %2082 = vmatprep.subr.bf16.mxu0 0
    %2083 = vmatpush1.bf16.msra.mxu0 %v2009
    %2084 = vmatprep.subr.bf16.mxu0 0
    %2085 = vmatpush1.bf16.msra.mxu0 %v2010
    %2086 = vmatprep.subr.bf16.mxu0 0
    %2087 = vmatpush1.bf16.msra.mxu0 %v2011
    %2088 = vmatprep.subr.bf16.mxu0 0
    %2089 = vmatpush1.bf16.msra.mxu0 %v2012
    %2090 = vmatprep.subr.bf16.mxu0 0
    %2091 = vmatpush1.bf16.msra.mxu0 %v2013
    %2092 = vmatprep.subr.bf16.mxu0 0
    %2093 = vmatpush1.bf16.msra.mxu0 %v2014
    %2094 = vmatprep.subr.bf16.mxu0 0
    %2095 = vmatpush1.bf16.msra.mxu0 %v2015
    %2096 = vmatprep.mubr.bf16.mxu0 %v1798
    %2097 = vmatmul.mubr.bf16.gmra.mrb[0].mxu0 %v1797
    %v2098 = vpop.f32.mrb[0].mxu0
    %v2099 = vadd.f32 %v1870, %v2098
    %v2100 = vpop.f32.mrb[0].mxu0
    %v2101 = vpop.f32.mrb[0].mxu0
    %v2102 = vpop.f32.mrb[0].mxu0
    %2103 = vdwg.mxu0
    %2104 = vmatprep.subr.bf16.mxu0 0
    %2105 = vmatpush1.bf16.msra.mxu0 %v2016
    %2106 = vmatprep.subr.bf16.mxu0 0
    %2107 = vmatpush1.bf16.msra.mxu0 %v2017
    %2108 = vmatprep.subr.bf16.mxu0 0
    %2109 = vmatpush1.bf16.msra.mxu0 %v2018
    %2110 = vmatprep.subr.bf16.mxu0 0
    %2111 = vmatpush1.bf16.msra.mxu0 %v2019
    %2112 = vmatprep.subr.bf16.mxu0 0
    %2113 = vmatpush1.bf16.msra.mxu0 %v2020
    %2114 = vmatprep.subr.bf16.mxu0 0
    %2115 = vmatpush1.bf16.msra.mxu0 %v2021
    %2116 = vmatprep.subr.bf16.mxu0 0
    %2117 = vmatpush1.bf16.msra.mxu0 %v2022
    %2118 = vmatprep.subr.bf16.mxu0 0
    %2119 = vmatpush1.bf16.msra.mxu0 %v2023
    %2120 = vmatprep.subr.bf16.mxu0 0
    %2121 = vmatpush1.bf16.msra.mxu0 %v2024
    %2122 = vmatprep.subr.bf16.mxu0 0
    %2123 = vmatpush1.bf16.msra.mxu0 %v2025
    %2124 = vmatprep.subr.bf16.mxu0 0
    %2125 = vmatpush1.bf16.msra.mxu0 %v2026
    %2126 = vmatprep.subr.bf16.mxu0 0
    %2127 = vmatpush1.bf16.msra.mxu0 %v2027
    %2128 = vmatprep.subr.bf16.mxu0 0
    %2129 = vmatpush1.bf16.msra.mxu0 %v2028
    %2130 = vmatprep.subr.bf16.mxu0 0
    %2131 = vmatpush1.bf16.msra.mxu0 %v2029
    %2132 = vmatprep.subr.bf16.mxu0 0
    %2133 = vmatpush1.bf16.msra.mxu0 %v2030
    %2134 = vmatprep.subr.bf16.mxu0 0
    %2135 = vmatpush1.bf16.msra.mxu0 %v2031
    %2136 = vmatprep.mubr.bf16.mxu0 %v1800
    %2137 = vmatmul.mubr.bf16.gmra.mrb[0].mxu0 %v1799
    %v2138 = vpop.f32.mrb[0].mxu0
    %v2139 = vadd.f32 %v2099, %v2138
    %v2140 = vpop.f32.mrb[0].mxu0
    %v2141 = vpop.f32.mrb[0].mxu0
    %v2142 = vpop.f32.mrb[0].mxu0
    %2143 = vdwg.mxu0
    %v2144 = vmul.f32 %v2139, 1.442695
    %v2145 = vpow.pop %v2144
    %v2146 = vld [vmem:[%s5] sm:$0x3]
    %2148 = vrot.lane.b32.xlu0 %v2146, 2
    %v2149 = vpop.permute.xlu0 %2148
    %v2151 = vmul.f32 %v2145, %v2149
    %2153 = vrot.lane.b32.xlu0 %v2151, 126
    %v2154 = vpop.permute.xlu0 %2153
    %v2156 = vadd.f32 %v2139, %v2154
    %vm2157 = vcmask 9216
    %2158 = vst.msk [vmem:[#allocation6] sm:$0x3] %vm2157, %v2156
    %v2159 = vmul.f32 %v2145, %v2145
    %v2160 = vmul.f32 %v2139, %v2139
    %2162 = vrot.lane.b32.xlu0 %v2160, 2
    %v2163 = vpop.permute.xlu0 %2162
    %v2165 = vadd.f32 %v2159, %v2163
    %v2166 = vsub.f32 %v2165, %v2139
    %v2167 = vsub.f32 %v2166, 0.5
    %2169 = vrot.lane.b32.xlu0 %v2167, 126
    %v2170 = vpop.permute.xlu0 %2169
    %v2172 = vsel %vm2157, %v2170, 0.0
    %2173 = vadd.xlane.f32.xlu0 %v2172
    %v2174 = vpop.xlane.xlu0 %2173
    %v2175 = vrot.slane %v2174, 4
    %v2176 = vadd.f32 %v2174, %v2175
    %v2177 = vrot.slane %v2176, 2
    %v2178 = vadd.f32 %v2176, %v2177
    %v2179 = vrot.slane %v2178, 1
    %v2180 = vadd.f32 %v2178, %v2179
    %s2181 = vtos %v2180
    %s2182 = scalar_lea.smem [#allocation7], 0
    %2183 = sst [smem:[%s2182]] %s2181
    // Predicated region
    $region30: #{tpu_custom_call.1} parent=1 // pred_check
      _
    $region31: #{tpu_custom_call.1} parent=1 // pred_check_branch
      %2185 = sbr.rel (0) target = $region33
    $region32: #{tpu_custom_call.1} parent=1 // pred_region
      %s2187 = ssub.s32 32, 32
      %2188 = vsyncadd [#allocation4], %s2187
      %s2190 = sshll.u32 [#allocation6], 4
      %s2191 = int_to_ptr.vmem [resolvable:$true] %s2190
      %2193 = dma.vmem_to_hbm [thread:$0]  %s2191, 32, %s6, [#allocation4]
    $region33: #{tpu_custom_call.1} parent=1 // pred_fallthru
      _
    // Predicated region
    $region34: #{tpu_custom_call.1} parent=1 // pred_check
      _
    $region35: #{tpu_custom_call.1} parent=1 // pred_check_branch
      %2195 = sbr.rel (0) target = $region37
    $region36: #{tpu_custom_call.1} parent=1 // pred_region
      %s2197 = ssub.s32 16, 16
      %2198 = vsyncadd [#allocation5], %s2197
      %2201 = dma.smem_to_hbm [#allocation7], 16, %s7, [#allocation5]
    $region37: #{tpu_custom_call.1} parent=1 // pred_fallthru
      _
    // Predicated region
    $region38: #{tpu_custom_call.1} parent=1 // pred_check
      _
    $region39: #{tpu_custom_call.1} parent=1 // pred_check_branch
      %2203 = sbr.rel (0) target = $region41
    $region40: #{tpu_custom_call.1} parent=1 // pred_region
      %2204 = dma.done [#allocation4], 32
    $region41: #{tpu_custom_call.1} parent=1 // pred_fallthru
      _
    // Predicated region
    $region42: #{tpu_custom_call.1} parent=1 // pred_check
      _
    $region43: #{tpu_custom_call.1} parent=1 // pred_check_branch
      %2206 = sbr.rel (0) target = $region45
    $region44: #{tpu_custom_call.1} parent=1 // pred_region
      %2207 = dma.done [#allocation5], 16
    $region45: #{tpu_custom_call.1} parent=1 // pred_fallthru
      _
    %2208 = sfence
    %2209 = vsyncpa [#allocation3], 1
    %2210 = vsyncpa [#allocation4], 1
    %2211 = vsyncpa [#allocation5], 1

</llo_original>
